<compile_context>
chip_gen: v7x
topology: tpu7x:2x2x1
jax: 0.10.0
libtpu: 0.0.40
codegen_flags: <defaults>
</compile_context>

<pallas_src>
import jax
import jax.numpy as jnp
from jax.experimental import pallas as pl
from jax.experimental.pallas import tpu as pltpu

LEAKY_SLOPE = 0.01  # F.leaky_relu default negative_slope


def _round_up(v, m):
    return (v + m - 1) // m * m


def _leaky_relu(v):
    return jnp.where(v >= 0, v, LEAKY_SLOPE * v)


# ----------------------------- Pallas kernels ------------------------------ #

def _glconv_add_kernel(sg_ref, sl_ref, wg_ref, wl_ref, o_ref):
    # sg_ref/sl_ref: [1, TM, 27*Cin] (bf16)   wg_ref/wl_ref: [27*Cin, Cout]
    # o_ref: [1, TM, Cout]    out = lrelu(conv_g) + lrelu(conv_l)
    g = jnp.dot(sg_ref[0], wg_ref[...], preferred_element_type=jnp.float32)
    l = jnp.dot(sl_ref[0], wl_ref[...], preferred_element_type=jnp.float32)
    o_ref[0] = (_leaky_relu(g) + _leaky_relu(l)).astype(o_ref.dtype)


def _glconv_cat_kernel(sg_ref, sl_ref, wg_ref, wl_ref, o_ref):
    # o_ref: [1, 2, TM, Cout]   slot 0 = lrelu(conv_g), slot 1 = lrelu(conv_l)
    # (the wrapper reshapes slot axis + H into the concatenated 2*H axis)
    g = jnp.dot(sg_ref[0], wg_ref[...], preferred_element_type=jnp.float32)
    l = jnp.dot(sl_ref[0], wl_ref[...], preferred_element_type=jnp.float32)
    o_ref[0, 0] = _leaky_relu(g).astype(o_ref.dtype)
    o_ref[0, 1] = _leaky_relu(l).astype(o_ref.dtype)


# ------------------------------ tiling choice ------------------------------ #

def _choose_row_tile(m_total, k, cout, out_copies,
                     max_rows=512, budget_bytes=16 * 1024 * 1024):
    """Largest divisor of m_total (preferably a multiple of 8) whose
    double-buffered VMEM blocks (2 bf16 slabs + f32 output, lanes padded to
    128) fit in `budget_bytes`."""
    k_pad = _round_up(k, 128)
    c_pad = _round_up(cout, 128)
    per_row = 2 * (2 * k_pad * 2 + out_copies * c_pad * 4)  # x2 = double buffer
    cap = max(1, min(m_total, max_rows, budget_bytes // per_row))
    for d in range(cap, 0, -1):
        if m_total % d == 0 and (d % 8 == 0 or d == m_total or d < 8):
            return d
    return 1


# ------------------------------ fused wrapper ------------------------------ #

def _glconv_pallas(slab_g, slab_l, wg2, wl2, *, row_tile, fm_sign, out_dtype):
    n, m_total, k = slab_g.shape
    cout = wg2.shape[-1]
    grid = (n, m_total // row_tile)

    in_specs = [
        pl.BlockSpec((1, row_tile, k), lambda i, t: (i, t, 0)),
        pl.BlockSpec((1, row_tile, k), lambda i, t: (i, t, 0)),
        pl.BlockSpec((k, cout), lambda i, t: (0, 0)),   # weights stay resident
        pl.BlockSpec((k, cout), lambda i, t: (0, 0)),
    ]
    if fm_sign:
        kernel = _glconv_cat_kernel
        out_shape = jax.ShapeDtypeStruct((n, 2, m_total, cout), out_dtype)
        out_specs = pl.BlockSpec((1, 2, row_tile, cout),
                                 lambda i, t: (i, 0, t, 0))
    else:
        kernel = _glconv_add_kernel
        out_shape = jax.ShapeDtypeStruct((n, m_total, cout), out_dtype)
        out_specs = pl.BlockSpec((1, row_tile, cout), lambda i, t: (i, t, 0))

    return pl.pallas_call(
        kernel,
        out_shape=out_shape,
        grid_spec=pltpu.PrefetchScalarGridSpec(
            num_scalar_prefetch=0,
            grid=grid,
            in_specs=in_specs,
            out_specs=out_specs,
        ),
        compiler_params=pltpu.CompilerParams(
            dimension_semantics=("parallel", "parallel"),
            vmem_limit_bytes=48 * 1024 * 1024,
        ),
    )(slab_g, slab_l, wg2, wl2)


def _im2col27(x):
    """x: [N, S, Hc, W, Cin] -> [N, S, Hc, W, 27*Cin].

    Tap order (ds, dh, dw, cin); zero padding of 1 on S/H/W is folded into the
    slab build (matches Conv3d kernel=3, stride=1, padding=1, bias=False)."""
    _, s, h, w, _ = x.shape
    xp = jnp.pad(x, ((0, 0), (1, 1), (1, 1), (1, 1), (0, 0)))
    taps = [xp[:, ds:ds + s, dh:dh + h, dw:dw + w, :]
            for ds in range(3) for dh in range(3) for dw in range(3)]
    return jnp.concatenate(taps, axis=-1)


def glconv_forward(x_ncshw, w_global, w_local, halving, fm_sign,
                   *, compute_dtype=jnp.bfloat16, row_tile=None):
    """GLConv.forward.

    x_ncshw : [n, c, s, h, w]        (PyTorch layout)
    w_*     : [Cout, Cin, 3, 3, 3]   (PyTorch Conv3d weights, bias=False)
    returns : [n, Cout, s, h, w]     if fm_sign is False
              [n, Cout, s, 2*h, w]   if fm_sign is True
    """
    n, cin, s, h, w = x_ncshw.shape
    cout = w_global.shape[0]
    out_dtype = x_ncshw.dtype
    k = 27 * cin
    m_total = s * h * w

    x = jnp.transpose(x_ncshw, (0, 2, 3, 4, 1))           # [n, s, h, w, c]

    slab_g = _im2col27(x)
    if halving == 0:
        slab_l = slab_g
    else:
        split = h // (2 ** halving)
        slab_l = jnp.concatenate(
            [_im2col27(x[:, :, i:i + split]) for i in range(0, h, split)],
            axis=2)

    slab_g = slab_g.reshape(n, m_total, k).astype(compute_dtype)
    slab_l = slab_l.reshape(n, m_total, k).astype(compute_dtype)
    wg2 = jnp.transpose(w_global, (2, 3, 4, 1, 0)).reshape(k, cout)
    wl2 = jnp.transpose(w_local, (2, 3, 4, 1, 0)).reshape(k, cout)
    wg2 = wg2.astype(compute_dtype)
    wl2 = wl2.astype(compute_dtype)

    if row_tile is None:
        row_tile = _choose_row_tile(m_total, k, cout, 2 if fm_sign else 1)
    assert m_total % row_tile == 0, (m_total, row_tile)

    out = _glconv_pallas(slab_g, slab_l, wg2, wl2,
                         row_tile=row_tile, fm_sign=fm_sign,
                         out_dtype=out_dtype)

    if not fm_sign:
        out = out.reshape(n, s, h, w, cout)
        return jnp.transpose(out, (0, 4, 1, 2, 3))        # [n, c, s, h, w]
    out = out.reshape(n, 2, s, h, w, cout)
    out = jnp.transpose(out, (0, 5, 2, 1, 3, 4))          # [n, c, s, 2, h, w]
    return out.reshape(n, cout, s, 2 * h, w)              # concat along H


# ------------------------- pure-JAX reference (check) ----------------------- #

def _ref_conv3d(x, wt):
    return jax.lax.conv_general_dilated(
        x, wt, window_strides=(1, 1, 1),
        padding=((1, 1), (1, 1), (1, 1)),
        dimension_numbers=("NCDHW", "OIDHW", "NCDHW"))


def _ref_glconv(x, wg, wl, halving, fm_sign):
    lr = lambda v: jnp.where(v >= 0, v, LEAKY_SLOPE * v)
    gob = _ref_conv3d(x, wg)
    if halving == 0:
        lcl = _ref_conv3d(x, wl)
    else:
        h = x.shape[3]
        ss = h // (2 ** halving)
        lcl = jnp.concatenate(
            [_ref_conv3d(x[:, :, :, i:i + ss], wl) for i in range(0, h, ss)],
            axis=3)
    if not fm_sign:
        return lr(gob) + lr(lcl)
    return lr(jnp.concatenate([gob, lcl], axis=3))


# ---------------------------------- main ----------------------------------- #

if __name__ == "__main__":
    key = jax.random.PRNGKey(0)
    k_x, k_wg, k_wl = jax.random.split(key, 3)

    # Small shapes consistent with GLConv: x = [n, c, s, h, w]
    N, Cin, Cout, S, H, W = 2, 4, 4, 8, 16, 16
    x = jax.random.normal(k_x, (N, Cin, S, H, W), dtype=jnp.float32)

    fan_in = Cin * 3 * 3 * 3
    bound = 1.0 / (fan_in ** 0.5)
    w_global = jax.random.uniform(k_wg, (Cout, Cin, 3, 3, 3),
                                  minval=-bound, maxval=bound,
                                  dtype=jnp.float32)
    w_local = jax.random.uniform(k_wl, (Cout, Cin, 3, 3, 3),
                                 minval=-bound, maxval=bound,
                                 dtype=jnp.float32)

    # bf16-rounded copies of the inputs: the kernel uses bf16 operands with
    # f32 accumulation, so it matches this reference tightly and the pure-f32
    # reference loosely.
    xq = x.astype(jnp.bfloat16).astype(jnp.float32)
    wgq = w_global.astype(jnp.bfloat16).astype(jnp.float32)
    wlq = w_local.astype(jnp.bfloat16).astype(jnp.float32)

    fwd = jax.jit(glconv_forward, static_argnums=(3, 4))

    for halving in (0, 1):
        for fm_sign in (False, True):
            out = jax.block_until_ready(
                fwd(x, w_global, w_local, halving, fm_sign))
            exp_h = 2 * H if fm_sign else H
            assert out.shape == (N, Cout, S, exp_h, W), out.shape

            ref_q = _ref_glconv(xq, wgq, wlq, halving, fm_sign)
            ref_f = _ref_glconv(x, w_global, w_local, halving, fm_sign)
            err_q = float(jnp.max(jnp.abs(out - ref_q)))
            err_f = float(jnp.max(jnp.abs(out - ref_f)))
            assert jnp.allclose(out, ref_q, rtol=1e-3, atol=1e-3), (
                "mismatch vs bf16-rounded reference", halving, fm_sign, err_q)
            assert jnp.allclose(out, ref_f, rtol=5e-2, atol=5e-2), (
                "mismatch vs f32 reference", halving, fm_sign, err_f)

    print("KERNEL_OK")
</pallas_src>

<mosaic_0001>
module attributes {stable_mosaic.version = 11 : i64} {
  func.func @_glconv_add_kernel(%arg0: i32, %arg1: i32, %arg2: memref<1x512x108xbf16, #tpu.memory_space<vmem>>, %arg3: memref<1x512x108xbf16, #tpu.memory_space<vmem>>, %arg4: memref<108x4xbf16, #tpu.memory_space<vmem>>, %arg5: memref<108x4xbf16, #tpu.memory_space<vmem>>, %arg6: memref<1x512x4xf32, #tpu.memory_space<vmem>>) attributes {dimension_semantics = [#tpu.dimension_semantics<parallel>, #tpu.dimension_semantics<parallel>], iteration_bounds = array<i64: 2, 4>, scalar_prefetch = 0 : i64, scratch_operands = 0 : i64, tpu.core_type = #tpu.core_type<tc>, window_params = [{transform_indices = @transform_0, window_bounds = array<i64: 1, 512, 108>}, {transform_indices = @transform_1, window_bounds = array<i64: 1, 512, 108>}, {pipeline_mode = #tpu.pipeline_mode<synchronous>, transform_indices = @transform_2, window_bounds = array<i64: 108, 4>}, {pipeline_mode = #tpu.pipeline_mode<synchronous>, transform_indices = @transform_3, window_bounds = array<i64: 108, 4>}, {transform_indices = @transform_4, window_bounds = array<i64: 1, 512, 4>}]} {
    %c0 = arith.constant 0 : index
    %c0_0 = arith.constant 0 : index
    %c0_1 = arith.constant 0 : index
    %0 = vector.load %arg2[%c0, %c0_0, %c0_1] : memref<1x512x108xbf16, #tpu.memory_space<vmem>>, vector<1x512x108xbf16>
    %1 = vector.shape_cast %0 : vector<1x512x108xbf16> to vector<512x108xbf16>
    %c0_2 = arith.constant 0 : index
    %c0_3 = arith.constant 0 : index
    %2 = vector.load %arg4[%c0_2, %c0_3] : memref<108x4xbf16, #tpu.memory_space<vmem>>, vector<108x4xbf16>
    %cst = arith.constant dense<0.000000e+00> : vector<512x4xf32>
    %3 = tpu.matmul %1, %2, %cst {dimension_numbers = #tpu.dot_dimension_numbers<[1], [0], [0], [1], [0, 0, 1, 1], [], []>} : vector<512x108xbf16>, vector<108x4xbf16>, vector<512x4xf32> -> vector<512x4xf32>
    %c0_4 = arith.constant 0 : index
    %c0_5 = arith.constant 0 : index
    %c0_6 = arith.constant 0 : index
    %4 = vector.load %arg3[%c0_4, %c0_5, %c0_6] : memref<1x512x108xbf16, #tpu.memory_space<vmem>>, vector<1x512x108xbf16>
    %5 = vector.shape_cast %4 : vector<1x512x108xbf16> to vector<512x108xbf16>
    %c0_7 = arith.constant 0 : index
    %c0_8 = arith.constant 0 : index
    %6 = vector.load %arg5[%c0_7, %c0_8] : memref<108x4xbf16, #tpu.memory_space<vmem>>, vector<108x4xbf16>
    %cst_9 = arith.constant dense<0.000000e+00> : vector<512x4xf32>
    %7 = tpu.matmul %5, %6, %cst_9 {dimension_numbers = #tpu.dot_dimension_numbers<[1], [0], [0], [1], [0, 0, 1, 1], [], []>} : vector<512x108xbf16>, vector<108x4xbf16>, vector<512x4xf32> -> vector<512x4xf32>
    %cst_10 = arith.constant 0.000000e+00 : f32
    %8 = vector.broadcast %cst_10 : f32 to vector<512x4xf32>
    %9 = arith.cmpf oge, %3, %8 : vector<512x4xf32>
    %cst_11 = arith.constant 0.00999999977 : f32
    %10 = vector.broadcast %cst_11 : f32 to vector<512x4xf32>
    %11 = arith.mulf %10, %3 : vector<512x4xf32>
    %12 = arith.select %9, %3, %11 : vector<512x4xi1>, vector<512x4xf32>
    %cst_12 = arith.constant 0.000000e+00 : f32
    %13 = vector.broadcast %cst_12 : f32 to vector<512x4xf32>
    %14 = arith.cmpf oge, %7, %13 : vector<512x4xf32>
    %cst_13 = arith.constant 0.00999999977 : f32
    %15 = vector.broadcast %cst_13 : f32 to vector<512x4xf32>
    %16 = arith.mulf %15, %7 : vector<512x4xf32>
    %17 = arith.select %14, %7, %16 : vector<512x4xi1>, vector<512x4xf32>
    %18 = arith.addf %12, %17 : vector<512x4xf32>
    %c0_14 = arith.constant 0 : index
    %c0_15 = arith.constant 0 : index
    %c0_16 = arith.constant 0 : index
    %19 = vector.load %arg6[%c0_14, %c0_15, %c0_16] : memref<1x512x4xf32, #tpu.memory_space<vmem>>, vector<1x512x4xf32>
    %20 = vector.shape_cast %19 : vector<1x512x4xf32> to vector<512x4xf32>
    %21 = vector.shape_cast %18 : vector<512x4xf32> to vector<1x512x4xf32>
    tpu.vector_store %arg6[%c0_14, %c0_15, %c0_16], %21 {strides = array<i32>} : memref<1x512x4xf32, #tpu.memory_space<vmem>>, vector<1x512x4xf32>,
    return
  }
  func.func @transform_0(%arg0: i32, %arg1: i32) -> (i32, i32, i32) {
    %c0_i32 = arith.constant 0 : i32
    %c0_i32_0 = arith.constant 0 : i32
    return %arg0, %arg1, %c0_i32 : i32, i32, i32
  }
  func.func @transform_1(%arg0: i32, %arg1: i32) -> (i32, i32, i32) {
    %c0_i32 = arith.constant 0 : i32
    %c0_i32_0 = arith.constant 0 : i32
    return %arg0, %arg1, %c0_i32 : i32, i32, i32
  }
  func.func @transform_2(%arg0: i32, %arg1: i32) -> (i32, i32) {
    %c0_i32 = arith.constant 0 : i32
    %c0_i32_0 = arith.constant 0 : i32
    %c0_i32_1 = arith.constant 0 : i32
    return %c0_i32, %c0_i32_0 : i32, i32
  }
  func.func @transform_3(%arg0: i32, %arg1: i32) -> (i32, i32) {
    %c0_i32 = arith.constant 0 : i32
    %c0_i32_0 = arith.constant 0 : i32
    %c0_i32_1 = arith.constant 0 : i32
    return %c0_i32, %c0_i32_0 : i32, i32
  }
  func.func @transform_4(%arg0: i32, %arg1: i32) -> (i32, i32, i32) {
    %c0_i32 = arith.constant 0 : i32
    %c0_i32_0 = arith.constant 0 : i32
    return %arg0, %arg1, %c0_i32 : i32, i32, i32
  }
}

</mosaic_0001>

<llo_original>
// kernel: glconv_forward.1
$region0: #{glconv_forward.1}
  #allocation0 [shape = 'u32[]', space=smem, size = 0x4, offset = 0x4, fixed_abs, tag = 'smem constant byte address 0x4 - core index']
  #allocation1 [shape = 'u32[144,128]{1,0:T(1,128)}', space=vmem, size = 0x12000, scoped, tag = 'internal scratch']
  %s0 = inlined_call_operand.vmem [shape: bf16[2,2048,108], index: 0, kind: input, shape index: {}, may-alias: {0,1}]
  %s1 = inlined_call_operand.vmem [shape: bf16[2,2048,108], index: 1, kind: input, shape index: {}, may-alias: {0,1}]
  %s2 = inlined_call_operand.vmem [shape: bf16[108,4], index: 2, kind: input, shape index: {}]
  %s3 = inlined_call_operand.vmem [shape: bf16[108,4], index: 3, kind: input, shape index: {}]
  %s4 = inlined_call_operand.vmem [shape: f32[2,2048,4], index: 4, kind: output, shape index: {}]
  %s5 = sld [smem:[#allocation0]]
  $region49: #{glconv_forward.1} parent=0
    _
  %s7 = ssub.s32 1, %s5
  %s8 = scalar_select 0, %s7, %s5
  loop: start=0, step=1, limit=10
  $region2: #{glconv_forward.1} parent=0 // loop_pre_header
    _
  $region3: #{glconv_forward.1} parent=0 // loop_header
    %s10 = sphi 0, %s14
    %p11 = scmp.ge.s32.totalorder %s10, 10
    %s17 = sphi 0, %s29
    %s18 = sphi 0, %s25
    %s19 = sphi 0, %s17
    %s20 = sphi 0, %s18
    %s21 = sphi 0, %s19
    %s22 = sphi 0, %s20
    %s34 = sphi 0, %s36
    %s37 = sphi 0, %s34
    %s38 = sphi 0, %s37
    %s54 = sphi 0, %s38
    %s62 = sphi 0, %s64
    %s65 = sphi 0, %s62
    %s66 = sphi 0, %s65
    %s82 = sphi 0, %s66
    %s86 = sphi 0, %s86
    %s88 = sphi 0, %s86
    %s89 = sphi 0, %s88
    %s103 = sphi 0, %s89
    %s107 = sphi 0, %s107
    %s109 = sphi 0, %s107
    %s110 = sphi 0, %s109
    %s124 = sphi 0, %s110
    %s132 = sphi 0, %s134
    %s135 = sphi 0, %s132
    %s136 = sphi 0, %s135
    %s152 = sphi 0, %s136
  $region4: #{glconv_forward.1} parent=0 // loop_header_branch
    %13 = sbr.rel (%p11) target = $region8
  $region5: #{glconv_forward.1} parent=0 // loop_body
    %s15 = ssub.s32 %s10, 1
    %s16 = ssub.s32 %s10, 2
    %s23 = sadd.s32 1, %s18
    %p24 = scmp.ge.s32.totalorder %s23, 4
    %s25 = scalar_select %p24, 0, %s23
    %s26 = sadd.s32 1, %s17
    %s27 = scalar_select %p24, %s26, %s17
    %p28 = scmp.ge.s32.totalorder %s27, 2
    %s29 = scalar_select %p28, 0, %s27
    %s30 = ssub.s32 %s17, %s29
    %s31 = ssub.s32 %s18, %s25
    %s32 = sor.u32 %s30, %s31
    %p33 = scmp.eq.s32.totalorder %s32, 0
    %s35 = sadd.s32 %s34, 1
    %s36 = scalar_select %p33, %s34, %s35
    %p39 = pneg %p33
    %p40 = scmp.eq.s32.totalorder %s10, 7
    %p41 = por %p39, %p40
    %p42 = scmp.ne.s32.totalorder %s34, %s37
    %p43 = scmp.eq.s32.totalorder %s10, 0
    %p44 = por %p42, %p43
    %p45 = scmp.ne.s32.totalorder %s34, %s37
    %p46 = scmp.eq.s32.totalorder %s15, 7
    %p47 = por %p45, %p46
    %p48 = scmp.ne.s32.totalorder %s37, %s38
    %p49 = scmp.eq.s32.totalorder %s15, 0
    %p50 = por %p48, %p49
    %p51 = scmp.ne.s32.totalorder %s37, %s38
    %p52 = scmp.eq.s32.totalorder %s16, 7
    %p53 = por %p51, %p52
    %p55 = scmp.ne.s32.totalorder %s38, %s54
    %p56 = scmp.eq.s32.totalorder %s16, 0
    %p57 = por %p55, %p56
    %s58 = ssub.s32 %s17, %s29
    %s59 = ssub.s32 %s18, %s25
    %s60 = sor.u32 %s58, %s59
    %p61 = scmp.eq.s32.totalorder %s60, 0
    %s63 = sadd.s32 %s62, 1
    %s64 = scalar_select %p61, %s62, %s63
    %p67 = pneg %p61
    %p68 = scmp.eq.s32.totalorder %s10, 7
    %p69 = por %p67, %p68
    %p70 = scmp.ne.s32.totalorder %s62, %s65
    %p71 = scmp.eq.s32.totalorder %s10, 0
    %p72 = por %p70, %p71
    %p73 = scmp.ne.s32.totalorder %s62, %s65
    %p74 = scmp.eq.s32.totalorder %s15, 7
    %p75 = por %p73, %p74
    %p76 = scmp.ne.s32.totalorder %s65, %s66
    %p77 = scmp.eq.s32.totalorder %s15, 0
    %p78 = por %p76, %p77
    %p79 = scmp.ne.s32.totalorder %s65, %s66
    %p80 = scmp.eq.s32.totalorder %s16, 7
    %p81 = por %p79, %p80
    %p83 = scmp.ne.s32.totalorder %s66, %s82
    %p84 = scmp.eq.s32.totalorder %s16, 0
    %p85 = por %p83, %p84
    %s87 = sadd.s32 %s86, 1
    %p90 = scmp.eq.s32.totalorder %s10, 7
    %p91 = scmp.ne.s32.totalorder %s86, %s88
    %p92 = scmp.eq.s32.totalorder %s10, 0
    %p93 = por %p91, %p92
    %p94 = scmp.ne.s32.totalorder %s86, %s88
    %p95 = scmp.eq.s32.totalorder %s15, 7
    %p96 = por %p94, %p95
    %p97 = scmp.ne.s32.totalorder %s88, %s89
    %p98 = scmp.eq.s32.totalorder %s15, 0
    %p99 = por %p97, %p98
    %p100 = scmp.ne.s32.totalorder %s88, %s89
    %p101 = scmp.eq.s32.totalorder %s16, 7
    %p102 = por %p100, %p101
    %p104 = scmp.ne.s32.totalorder %s89, %s103
    %p105 = scmp.eq.s32.totalorder %s16, 0
    %p106 = por %p104, %p105
    %s108 = sadd.s32 %s107, 1
    %p111 = scmp.eq.s32.totalorder %s10, 7
    %p112 = scmp.ne.s32.totalorder %s107, %s109
    %p113 = scmp.eq.s32.totalorder %s10, 0
    %p114 = por %p112, %p113
    %p115 = scmp.ne.s32.totalorder %s107, %s109
    %p116 = scmp.eq.s32.totalorder %s15, 7
    %p117 = por %p115, %p116
    %p118 = scmp.ne.s32.totalorder %s109, %s110
    %p119 = scmp.eq.s32.totalorder %s15, 0
    %p120 = por %p118, %p119
    %p121 = scmp.ne.s32.totalorder %s109, %s110
    %p122 = scmp.eq.s32.totalorder %s16, 7
    %p123 = por %p121, %p122
    %p125 = scmp.ne.s32.totalorder %s110, %s124
    %p126 = scmp.eq.s32.totalorder %s16, 0
    %p127 = por %p125, %p126
    %s128 = ssub.s32 %s17, %s29
    %s129 = ssub.s32 %s18, %s25
    %s130 = sor.u32 %s128, %s129
    %p131 = scmp.eq.s32.totalorder %s130, 0
    %s133 = sadd.s32 %s132, 1
    %s134 = scalar_select %p131, %s132, %s133
    %p137 = pneg %p131
    %p138 = scmp.eq.s32.totalorder %s10, 7
    %p139 = por %p137, %p138
    %p140 = scmp.ne.s32.totalorder %s132, %s135
    %p141 = scmp.eq.s32.totalorder %s10, 0
    %p142 = por %p140, %p141
    %p143 = scmp.ne.s32.totalorder %s132, %s135
    %p144 = scmp.eq.s32.totalorder %s15, 7
    %p145 = por %p143, %p144
    %p146 = scmp.ne.s32.totalorder %s135, %s136
    %p147 = scmp.eq.s32.totalorder %s15, 0
    %p148 = por %p146, %p147
    %p149 = scmp.ne.s32.totalorder %s135, %s136
    %p150 = scmp.eq.s32.totalorder %s16, 7
    %p151 = por %p149, %p150
    %p153 = scmp.ne.s32.totalorder %s136, %s152
    %p154 = scmp.eq.s32.totalorder %s16, 0
    %p155 = por %p153, %p154
    %p156 = scmp.le.s32.totalorder 1, %s10
    %p157 = scmp.lt.s32.totalorder %s10, 9
    %p158 = pnand %p156, %p157
    %p159 = pneg %p158
    // Predicated region
    $region9: #{glconv_forward.1} parent=5 // pred_check
      _
    $region10: #{glconv_forward.1} parent=5 // pred_check_branch
      %161 = sbr.rel (%p158) target = $region12
    $region11: #{glconv_forward.1} parent=5 // pred_region
      %s162 = ssub.s32 %s10, 1
      // Predicated region
      $region13: #{glconv_forward.1} parent=11 // pred_check
        %p163 = pneg %p99
      $region14: #{glconv_forward.1} parent=11 // pred_check_branch
        %165 = sbr.rel (%p163) target = $region16
      $region15: #{glconv_forward.1} parent=11 // pred_region
        _
      $region16: #{glconv_forward.1} parent=11 // pred_fallthru
        _
      // Predicated region
      $region17: #{glconv_forward.1} parent=11 // pred_check
        %p166 = pneg %p120
      $region18: #{glconv_forward.1} parent=11 // pred_check_branch
        %168 = sbr.rel (%p166) target = $region20
      $region19: #{glconv_forward.1} parent=11 // pred_region
        _
      $region20: #{glconv_forward.1} parent=11 // pred_fallthru
        _
    $region12: #{glconv_forward.1} parent=5 // pred_fallthru
      _
    %p169 = scmp.lt.s32.totalorder %s10, 8
    // Predicated region
    $region21: #{glconv_forward.1} parent=5 // pred_check
      %p170 = pneg %p169
    $region22: #{glconv_forward.1} parent=5 // pred_check_branch
      %172 = sbr.rel (%p170) target = $region24
    $region23: #{glconv_forward.1} parent=5 // pred_region
      // Predicated region
      $region25: #{glconv_forward.1} parent=23 // pred_check
        %p173 = pneg %p44
      $region26: #{glconv_forward.1} parent=23 // pred_check_branch
        %175 = sbr.rel (%p173) target = $region28
      $region27: #{glconv_forward.1} parent=23 // pred_region
        %s176 = smul.u32 64, %s18
        %p177 = scmp.lt.s32.totalorder %s17, 1
        %s178 = scalar_select %p177, %s17, 1
        %p179 = scmp.lt.s32.totalorder %s176, 255
        %s180 = scalar_select %p179, %s176, 255
        %s181 = smul.addr %s178, 256
        %s182 = sadd.s32 %s180, %s181
        %s183 = smul.addr %s182, 4
        %s184 = scalar_lea.vmem %s0, %s183
        %s185 = smul.u32 64, %s18
      $region28: #{glconv_forward.1} parent=23 // pred_fallthru
        _
      // Predicated region
      $region29: #{glconv_forward.1} parent=23 // pred_check
        %p186 = pneg %p72
      $region30: #{glconv_forward.1} parent=23 // pred_check_branch
        %188 = sbr.rel (%p186) target = $region32
      $region31: #{glconv_forward.1} parent=23 // pred_region
        %s189 = smul.u32 64, %s18
        %p190 = scmp.lt.s32.totalorder %s17, 1
        %s191 = scalar_select %p190, %s17, 1
        %p192 = scmp.lt.s32.totalorder %s189, 255
        %s193 = scalar_select %p192, %s189, 255
        %s194 = smul.addr %s191, 256
        %s195 = sadd.s32 %s193, %s194
        %s196 = smul.addr %s195, 4
        %s197 = scalar_lea.vmem %s1, %s196
        %s198 = smul.u32 64, %s18
      $region32: #{glconv_forward.1} parent=23 // pred_fallthru
        _
    $region24: #{glconv_forward.1} parent=5 // pred_fallthru
      _
    %p199 = scmp.le.s32.totalorder 1, %s10
    %p200 = scmp.lt.s32.totalorder %s10, 9
    %p201 = pnand %p199, %p200
    %p202 = pneg %p201
    // Predicated region
    $region33: #{glconv_forward.1} parent=5 // pred_check
      _
    $region34: #{glconv_forward.1} parent=5 // pred_check_branch
      %204 = sbr.rel (%p201) target = $region36
    $region35: #{glconv_forward.1} parent=5 // pred_region
      %s205 = ssub.s32 %s10, 1
      %s206 = smul.u32 64, %s20
      %p207 = scmp.lt.s32.totalorder %s19, 1
      %s208 = scalar_select %p207, %s19, 1
      %p209 = scmp.lt.s32.totalorder %s206, 255
      %s210 = scalar_select %p209, %s206, 255
      %s211 = smul.addr %s208, 256
      %s212 = sadd.s32 %s210, %s211
      %s213 = smul.addr %s212, 4
      %s214 = scalar_lea.vmem %s0, %s213
      %p215 = pneg %p50
      %p216 = pneg %p47
      %s217 = smul.u32 64, %s20
      %p218 = scmp.lt.s32.totalorder %s19, 1
      %s219 = scalar_select %p218, %s19, 1
      %p220 = scmp.lt.s32.totalorder %s217, 255
      %s221 = scalar_select %p220, %s217, 255
      %s222 = smul.addr %s219, 256
      %s223 = sadd.s32 %s221, %s222
      %s224 = smul.addr %s223, 4
      %s225 = scalar_lea.vmem %s1, %s224
      %p226 = pneg %p78
      %p227 = pneg %p75
      %p228 = pneg %p99
      %p229 = pneg %p96
      %p230 = pneg %p120
      %p231 = pneg %p117
      %p232 = pneg %p148
      %p233 = pneg %p145
      %s234 = smul.u32 64, %s20
      %p235 = scmp.lt.s32.totalorder %s19, 1
      %s236 = scalar_select %p235, %s19, 1
      %p237 = scmp.lt.s32.totalorder %s234, 255
      %s238 = scalar_select %p237, %s234, 255
      %s239 = smul.addr %s236, 256
      %s240 = sadd.s32 %s238, %s239
      %s241 = smul.addr %s240, 8
      %s242 = scalar_lea.vmem %s4, %s241
      %s243 = smul.u32 64, %s20
      %p244 = scmp.lt.s32.totalorder %s19, 1
      %s245 = scalar_select %p244, %s19, 1
      %p246 = scmp.lt.s32.totalorder %s243, 255
      %s247 = scalar_select %p246, %s243, 255
      %s248 = smul.addr %s245, 256
      %s249 = sadd.s32 %s247, %s248
      %s250 = smul.addr %s249, 4
      %s251 = scalar_lea.vmem %s0, %s250
      %s252 = smul.u32 64, %s20
      %s253 = smul.u32 64, %s20
      %p254 = scmp.lt.s32.totalorder %s19, 1
      %s255 = scalar_select %p254, %s19, 1
      %p256 = scmp.lt.s32.totalorder %s253, 255
      %s257 = scalar_select %p256, %s253, 255
      %s258 = smul.addr %s255, 256
      %s259 = sadd.s32 %s257, %s258
      %s260 = smul.addr %s259, 4
      %s261 = scalar_lea.vmem %s1, %s260
      %s262 = smul.u32 64, %s20
      %s263 = smul.u32 64, %s20
      %p264 = scmp.lt.s32.totalorder %s19, 1
      %s265 = scalar_select %p264, %s19, 1
      %p266 = scmp.lt.s32.totalorder %s263, 255
      %s267 = scalar_select %p266, %s263, 255
      %s268 = smul.addr %s265, 256
      %s269 = sadd.s32 %s267, %s268
      %s270 = smul.addr %s269, 8
      %s271 = scalar_lea.vmem %s4, %s270
      %s272 = smul.u32 64, %s20
      %v274 = vld [vmem:[%s251] sm:$0xf]
      %v275 = vld [vmem:[%s251 + $0x4] sm:$0xf]
      %v276 = vld [vmem:[%s251 + $0x8] sm:$0xf]
      %v277 = vld [vmem:[%s251 + $0xc] sm:$0xf]
      %v278 = vld [vmem:[%s251 + $0x10] sm:$0xf]
      %v279 = vld [vmem:[%s251 + $0x14] sm:$0xf]
      %v280 = vld [vmem:[%s251 + $0x18] sm:$0xf]
      %v281 = vld [vmem:[%s251 + $0x1c] sm:$0xf]
      %v282 = vld [vmem:[%s251 + $0x20] sm:$0xf]
      %v283 = vld [vmem:[%s251 + $0x24] sm:$0xf]
      %v284 = vld [vmem:[%s251 + $0x28] sm:$0xf]
      %v285 = vld [vmem:[%s251 + $0x2c] sm:$0xf]
      %v286 = vld [vmem:[%s251 + $0x30] sm:$0xf]
      %v287 = vld [vmem:[%s251 + $0x34] sm:$0xf]
      %v288 = vld [vmem:[%s251 + $0x38] sm:$0xf]
      %v289 = vld [vmem:[%s251 + $0x3c] sm:$0xf]
      %v290 = vld [vmem:[%s251 + $0x40] sm:$0xf]
      %v291 = vld [vmem:[%s251 + $0x44] sm:$0xf]
      %v292 = vld [vmem:[%s251 + $0x48] sm:$0xf]
      %v293 = vld [vmem:[%s251 + $0x4c] sm:$0xf]
      %v294 = vld [vmem:[%s251 + $0x50] sm:$0xf]
      %v295 = vld [vmem:[%s251 + $0x54] sm:$0xf]
      %v296 = vld [vmem:[%s251 + $0x58] sm:$0xf]
      %v297 = vld [vmem:[%s251 + $0x5c] sm:$0xf]
      %v298 = vld [vmem:[%s251 + $0x60] sm:$0xf]
      %v299 = vld [vmem:[%s251 + $0x64] sm:$0xf]
      %v300 = vld [vmem:[%s251 + $0x68] sm:$0xf]
      %v301 = vld [vmem:[%s251 + $0x6c] sm:$0xf]
      %v302 = vld [vmem:[%s251 + $0x70] sm:$0xf]
      %v303 = vld [vmem:[%s251 + $0x74] sm:$0xf]
      %v304 = vld [vmem:[%s251 + $0x78] sm:$0xf]
      %v305 = vld [vmem:[%s251 + $0x7c] sm:$0xf]
      %v306 = vld [vmem:[%s251 + $0x80] sm:$0xf]
      %v307 = vld [vmem:[%s251 + $0x84] sm:$0xf]
      %v308 = vld [vmem:[%s251 + $0x88] sm:$0xf]
      %v309 = vld [vmem:[%s251 + $0x8c] sm:$0xf]
      %v310 = vld [vmem:[%s251 + $0x90] sm:$0xf]
      %v311 = vld [vmem:[%s251 + $0x94] sm:$0xf]
      %v312 = vld [vmem:[%s251 + $0x98] sm:$0xf]
      %v313 = vld [vmem:[%s251 + $0x9c] sm:$0xf]
      %v314 = vld [vmem:[%s251 + $0xa0] sm:$0xf]
      %v315 = vld [vmem:[%s251 + $0xa4] sm:$0xf]
      %v316 = vld [vmem:[%s251 + $0xa8] sm:$0xf]
      %v317 = vld [vmem:[%s251 + $0xac] sm:$0xf]
      %v318 = vld [vmem:[%s251 + $0xb0] sm:$0xf]
      %v319 = vld [vmem:[%s251 + $0xb4] sm:$0xf]
      %v320 = vld [vmem:[%s251 + $0xb8] sm:$0xf]
      %v321 = vld [vmem:[%s251 + $0xbc] sm:$0xf]
      %v322 = vld [vmem:[%s251 + $0xc0] sm:$0xf]
      %v323 = vld [vmem:[%s251 + $0xc4] sm:$0xf]
      %v324 = vld [vmem:[%s251 + $0xc8] sm:$0xf]
      %v325 = vld [vmem:[%s251 + $0xcc] sm:$0xf]
      %v326 = vld [vmem:[%s251 + $0xd0] sm:$0xf]
      %v327 = vld [vmem:[%s251 + $0xd4] sm:$0xf]
      %v328 = vld [vmem:[%s251 + $0xd8] sm:$0xf]
      %v329 = vld [vmem:[%s251 + $0xdc] sm:$0xf]
      %v330 = vld [vmem:[%s251 + $0xe0] sm:$0xf]
      %v331 = vld [vmem:[%s251 + $0xe4] sm:$0xf]
      %v332 = vld [vmem:[%s251 + $0xe8] sm:$0xf]
      %v333 = vld [vmem:[%s251 + $0xec] sm:$0xf]
      %v334 = vld [vmem:[%s251 + $0xf0] sm:$0xf]
      %v335 = vld [vmem:[%s251 + $0xf4] sm:$0xf]
      %v336 = vld [vmem:[%s251 + $0xf8] sm:$0xf]
      %v337 = vld [vmem:[%s251 + $0xfc] sm:$0xf]
      %v338 = vld [vmem:[%s2] sm:$0xf]
      %v339 = vld [vmem:[%s2 + $0x4] sm:$0xf]
      %v340 = vld [vmem:[%s2 + $0x8] sm:$0xf]
      %v341 = vld [vmem:[%s2 + $0xc] sm:$0xf]
      %v342 = vld [vmem:[%s2 + $0x10] sm:$0xf]
      %v343 = vld [vmem:[%s2 + $0x14] sm:$0xf]
      %v344 = vld [vmem:[%s2 + $0x18] sm:$0xf]
      %v345 = vld [vmem:[%s2 + $0x1c] sm:$0xf]
      %v346 = vld [vmem:[%s2 + $0x20] sm:$0xf]
      %v347 = vld [vmem:[%s2 + $0x24] sm:$0xf]
      %v348 = vld [vmem:[%s2 + $0x28] sm:$0xf]
      %v349 = vld [vmem:[%s2 + $0x2c] sm:$0xf]
      %v350 = vld [vmem:[%s2 + $0x30] sm:$0xf]
      %v351 = vld [vmem:[%s2 + $0x34] sm:$0x3]
      %v416 = vunpack.c.l.b16 %v274
      %v417 = vunpack.c.l.b16 %v275
      %v418 = vunpack.c.l.b16 %v276
      %v419 = vunpack.c.l.b16 %v277
      %v420 = vunpack.c.l.b16 %v278
      %v421 = vunpack.c.l.b16 %v279
      %v422 = vunpack.c.l.b16 %v280
      %v423 = vunpack.c.l.b16 %v281
      %v424 = vunpack.c.l.b16 %v282
      %v425 = vunpack.c.l.b16 %v283
      %v426 = vunpack.c.l.b16 %v284
      %v427 = vunpack.c.l.b16 %v285
      %v428 = vunpack.c.l.b16 %v286
      %v429 = vunpack.c.l.b16 %v287
      %v430 = vunpack.c.l.b16 %v288
      %v431 = vunpack.c.l.b16 %v289
      %v432 = vunpack.c.l.b16 %v290
      %v433 = vunpack.c.l.b16 %v291
      %v434 = vunpack.c.l.b16 %v292
      %v435 = vunpack.c.l.b16 %v293
      %v436 = vunpack.c.l.b16 %v294
      %v437 = vunpack.c.l.b16 %v295
      %v438 = vunpack.c.l.b16 %v296
      %v439 = vunpack.c.l.b16 %v297
      %v440 = vunpack.c.l.b16 %v298
      %v441 = vunpack.c.l.b16 %v299
      %v442 = vunpack.c.l.b16 %v300
      %v443 = vunpack.c.l.b16 %v301
      %v444 = vunpack.c.l.b16 %v302
      %v445 = vunpack.c.l.b16 %v303
      %v446 = vunpack.c.l.b16 %v304
      %v447 = vunpack.c.l.b16 %v305
      %v448 = vunpack.c.l.b16 %v306
      %v449 = vunpack.c.l.b16 %v307
      %v450 = vunpack.c.l.b16 %v308
      %v451 = vunpack.c.l.b16 %v309
      %v452 = vunpack.c.l.b16 %v310
      %v453 = vunpack.c.l.b16 %v311
      %v454 = vunpack.c.l.b16 %v312
      %v455 = vunpack.c.l.b16 %v313
      %v456 = vunpack.c.l.b16 %v314
      %v457 = vunpack.c.l.b16 %v315
      %v458 = vunpack.c.l.b16 %v316
      %v459 = vunpack.c.l.b16 %v317
      %v460 = vunpack.c.l.b16 %v318
      %v461 = vunpack.c.l.b16 %v319
      %v462 = vunpack.c.l.b16 %v320
      %v463 = vunpack.c.l.b16 %v321
      %v464 = vunpack.c.l.b16 %v322
      %v465 = vunpack.c.l.b16 %v323
      %v466 = vunpack.c.l.b16 %v324
      %v467 = vunpack.c.l.b16 %v325
      %v468 = vunpack.c.l.b16 %v326
      %v469 = vunpack.c.l.b16 %v327
      %v470 = vunpack.c.l.b16 %v328
      %v471 = vunpack.c.l.b16 %v329
      %v472 = vunpack.c.l.b16 %v330
      %v473 = vunpack.c.l.b16 %v331
      %v474 = vunpack.c.l.b16 %v332
      %v475 = vunpack.c.l.b16 %v333
      %v476 = vunpack.c.l.b16 %v334
      %v477 = vunpack.c.l.b16 %v335
      %v478 = vunpack.c.l.b16 %v336
      %v479 = vunpack.c.l.b16 %v337
      %v480 = vpack.c.b16 %v417, %v416
      %v481 = vpack.c.b16 %v419, %v418
      %v482 = vpack.c.b16 %v421, %v420
      %v483 = vpack.c.b16 %v423, %v422
      %v484 = vpack.c.b16 %v425, %v424
      %v485 = vpack.c.b16 %v427, %v426
      %v486 = vpack.c.b16 %v429, %v428
      %v487 = vpack.c.b16 %v431, %v430
      %v488 = vpack.c.b16 %v433, %v432
      %v489 = vpack.c.b16 %v435, %v434
      %v490 = vpack.c.b16 %v437, %v436
      %v491 = vpack.c.b16 %v439, %v438
      %v492 = vpack.c.b16 %v441, %v440
      %v493 = vpack.c.b16 %v443, %v442
      %v494 = vpack.c.b16 %v445, %v444
      %v495 = vpack.c.b16 %v447, %v446
      %v496 = vpack.c.b16 %v449, %v448
      %v497 = vpack.c.b16 %v451, %v450
      %v498 = vpack.c.b16 %v453, %v452
      %v499 = vpack.c.b16 %v455, %v454
      %v500 = vpack.c.b16 %v457, %v456
      %v501 = vpack.c.b16 %v459, %v458
      %v502 = vpack.c.b16 %v461, %v460
      %v503 = vpack.c.b16 %v463, %v462
      %v504 = vpack.c.b16 %v465, %v464
      %v505 = vpack.c.b16 %v467, %v466
      %v506 = vpack.c.b16 %v469, %v468
      %v507 = vpack.c.b16 %v471, %v470
      %v508 = vpack.c.b16 %v473, %v472
      %v509 = vpack.c.b16 %v475, %v474
      %v510 = vpack.c.b16 %v477, %v476
      %v511 = vpack.c.b16 %v479, %v478
      %v526 = vunpack.c.l.b16 %v338
      %v527 = vunpack.c.l.b16 %v339
      %v528 = vunpack.c.l.b16 %v340
      %v529 = vunpack.c.l.b16 %v341
      %v530 = vunpack.c.l.b16 %v342
      %v531 = vunpack.c.l.b16 %v343
      %v532 = vunpack.c.l.b16 %v344
      %v533 = vunpack.c.l.b16 %v345
      %v534 = vunpack.c.l.b16 %v346
      %v535 = vunpack.c.l.b16 %v347
      %v536 = vunpack.c.l.b16 %v348
      %v537 = vunpack.c.l.b16 %v349
      %v538 = vunpack.c.l.b16 %v350
      %v539 = vunpack.c.l.b16 %v351
      %v540 = vpack.c.b16 %v527, %v526
      %v541 = vpack.c.b16 %v529, %v528
      %v542 = vpack.c.b16 %v531, %v530
      %v543 = vpack.c.b16 %v533, %v532
      %v544 = vpack.c.b16 %v535, %v534
      %v545 = vpack.c.b16 %v537, %v536
      %v546 = vpack.c.b16 %v539, %v538
      %vm553 = vcmask 883712
      %v555 = vsel %vm553, %v480, 0
      %v558 = vsel %vm553, %v481, 0
      %v561 = vsel %vm553, %v482, 0
      %v564 = vsel %vm553, %v483, 0
      %v567 = vsel %vm553, %v484, 0
      %v570 = vsel %vm553, %v485, 0
      %v573 = vsel %vm553, %v486, 0
      %v576 = vsel %vm553, %v487, 0
      %v579 = vsel %vm553, %v488, 0
      %v582 = vsel %vm553, %v489, 0
      %v585 = vsel %vm553, %v490, 0
      %v588 = vsel %vm553, %v491, 0
      %v591 = vsel %vm553, %v492, 0
      %v594 = vsel %vm553, %v493, 0
      %v597 = vsel %vm553, %v494, 0
      %v600 = vsel %vm553, %v495, 0
      %v603 = vsel %vm553, %v496, 0
      %v606 = vsel %vm553, %v497, 0
      %v609 = vsel %vm553, %v498, 0
      %v612 = vsel %vm553, %v499, 0
      %v615 = vsel %vm553, %v500, 0
      %v618 = vsel %vm553, %v501, 0
      %v621 = vsel %vm553, %v502, 0
      %v624 = vsel %vm553, %v503, 0
      %v627 = vsel %vm553, %v504, 0
      %v630 = vsel %vm553, %v505, 0
      %v633 = vsel %vm553, %v506, 0
      %v636 = vsel %vm553, %v507, 0
      %v639 = vsel %vm553, %v508, 0
      %v642 = vsel %vm553, %v509, 0
      %v645 = vsel %vm553, %v510, 0
      %v648 = vsel %vm553, %v511, 0
      %vm650 = vcmask 1045504
      %v652 = vsel %vm650, %v546, 0
      %654 = vmatprep.subr.bf16.mxu0 0
      %655 = vmatpush1.bf16.msra.mxu0 %v540
      %656 = vmatprep.subr.bf16.mxu0 0
      %657 = vmatpush1.bf16.msra.mxu0 %v541
      %658 = vmatprep.subr.bf16.mxu0 0
      %659 = vmatpush1.bf16.msra.mxu0 %v542
      %660 = vmatprep.subr.bf16.mxu0 0
      %661 = vmatpush1.bf16.msra.mxu0 %v543
      %662 = vmatprep.subr.bf16.mxu0 0
      %663 = vmatpush1.bf16.msra.mxu0 %v544
      %664 = vmatprep.subr.bf16.mxu0 0
      %665 = vmatpush1.bf16.msra.mxu0 %v545
      %666 = vmatprep.subr.bf16.mxu0 0
      %667 = vmatpush1.bf16.msra.mxu0 %v652
      %668 = vmatprep.subr.bf16.mxu0 0
      %669 = vmatpush1.bf16.msra.mxu0 0
      %670 = vmatprep.subr.bf16.mxu0 0
      %671 = vmatpush1.bf16.msra.mxu0 0
      %672 = vmatprep.subr.bf16.mxu0 0
      %673 = vmatpush1.bf16.msra.mxu0 0
      %674 = vmatprep.subr.bf16.mxu0 0
      %675 = vmatpush1.bf16.msra.mxu0 0
      %676 = vmatprep.subr.bf16.mxu0 0
      %677 = vmatpush1.bf16.msra.mxu0 0
      %678 = vmatprep.subr.bf16.mxu0 0
      %679 = vmatpush1.bf16.msra.mxu0 0
      %680 = vmatprep.subr.bf16.mxu0 0
      %681 = vmatpush1.bf16.msra.mxu0 0
      %682 = vmatprep.subr.bf16.mxu0 0
      %683 = vmatpush1.bf16.msra.mxu0 0
      %684 = vmatprep.subr.bf16.mxu0 0
      %685 = vmatpush1.bf16.msra.mxu0 0
      %686 = vmatprep.mubr.bf16.mxu0 0
      %687 = vmatmul.mubr.bf16.gmra.mrb[0].mxu0 %v555
      %v688 = vpop.f32.mrb[0].mxu0
      %v689 = vadd.f32 0.0, %v688
      %v690 = vpop.f32.mrb[0].mxu0
      %v691 = vpop.f32.mrb[0].mxu0
      %v692 = vadd.f32 0.0, %v691
      %v693 = vpop.f32.mrb[0].mxu0
      %694 = vmatprep.mubr.bf16.mxu0 0
      %695 = vmatmul.mubr.bf16.gmra.mrb[0].mxu0 %v558
      %v696 = vpop.f32.mrb[0].mxu0
      %v697 = vadd.f32 0.0, %v696
      %v698 = vpop.f32.mrb[0].mxu0
      %v699 = vpop.f32.mrb[0].mxu0
      %v700 = vadd.f32 0.0, %v699
      %v701 = vpop.f32.mrb[0].mxu0
      %702 = vmatprep.mubr.bf16.mxu0 0
      %703 = vmatmul.mubr.bf16.gmra.mrb[0].mxu0 %v561
      %v704 = vpop.f32.mrb[0].mxu0
      %v705 = vadd.f32 0.0, %v704
      %v706 = vpop.f32.mrb[0].mxu0
      %v707 = vpop.f32.mrb[0].mxu0
      %v708 = vadd.f32 0.0, %v707
      %v709 = vpop.f32.mrb[0].mxu0
      %710 = vmatprep.mubr.bf16.mxu0 0
      %711 = vmatmul.mubr.bf16.gmra.mrb[0].mxu0 %v564
      %v712 = vpop.f32.mrb[0].mxu0
      %v713 = vadd.f32 0.0, %v712
      %v714 = vpop.f32.mrb[0].mxu0
      %v715 = vpop.f32.mrb[0].mxu0
      %v716 = vadd.f32 0.0, %v715
      %v717 = vpop.f32.mrb[0].mxu0
      %718 = vmatprep.mubr.bf16.mxu0 0
      %719 = vmatmul.mubr.bf16.gmra.mrb[0].mxu0 %v567
      %v720 = vpop.f32.mrb[0].mxu0
      %v721 = vadd.f32 0.0, %v720
      %v722 = vpop.f32.mrb[0].mxu0
      %v723 = vpop.f32.mrb[0].mxu0
      %v724 = vadd.f32 0.0, %v723
      %v725 = vpop.f32.mrb[0].mxu0
      %726 = vmatprep.mubr.bf16.mxu0 0
      %727 = vmatmul.mubr.bf16.gmra.mrb[0].mxu0 %v570
      %v728 = vpop.f32.mrb[0].mxu0
      %v729 = vadd.f32 0.0, %v728
      %v730 = vpop.f32.mrb[0].mxu0
      %v731 = vpop.f32.mrb[0].mxu0
      %v732 = vadd.f32 0.0, %v731
      %v733 = vpop.f32.mrb[0].mxu0
      %734 = vmatprep.mubr.bf16.mxu0 0
      %735 = vmatmul.mubr.bf16.gmra.mrb[0].mxu0 %v573
      %v736 = vpop.f32.mrb[0].mxu0
      %v737 = vadd.f32 0.0, %v736
      %v738 = vpop.f32.mrb[0].mxu0
      %v739 = vpop.f32.mrb[0].mxu0
      %v740 = vadd.f32 0.0, %v739
      %v741 = vpop.f32.mrb[0].mxu0
      %742 = vmatprep.mubr.bf16.mxu0 0
      %743 = vmatmul.mubr.bf16.gmra.mrb[0].mxu0 %v576
      %v744 = vpop.f32.mrb[0].mxu0
      %v745 = vadd.f32 0.0, %v744
      %v746 = vpop.f32.mrb[0].mxu0
      %v747 = vpop.f32.mrb[0].mxu0
      %v748 = vadd.f32 0.0, %v747
      %v749 = vpop.f32.mrb[0].mxu0
      %750 = vmatprep.mubr.bf16.mxu0 0
      %751 = vmatmul.mubr.bf16.gmra.mrb[0].mxu0 %v579
      %v752 = vpop.f32.mrb[0].mxu0
      %v753 = vadd.f32 0.0, %v752
      %v754 = vpop.f32.mrb[0].mxu0
      %v755 = vpop.f32.mrb[0].mxu0
      %v756 = vadd.f32 0.0, %v755
      %v757 = vpop.f32.mrb[0].mxu0
      %758 = vmatprep.mubr.bf16.mxu0 0
      %759 = vmatmul.mubr.bf16.gmra.mrb[0].mxu0 %v582
      %v760 = vpop.f32.mrb[0].mxu0
      %v761 = vadd.f32 0.0, %v760
      %v762 = vpop.f32.mrb[0].mxu0
      %v763 = vpop.f32.mrb[0].mxu0
      %v764 = vadd.f32 0.0, %v763
      %v765 = vpop.f32.mrb[0].mxu0
      %766 = vmatprep.mubr.bf16.mxu0 0
      %767 = vmatmul.mubr.bf16.gmra.mrb[0].mxu0 %v585
      %v768 = vpop.f32.mrb[0].mxu0
      %v769 = vadd.f32 0.0, %v768
      %v770 = vpop.f32.mrb[0].mxu0
      %v771 = vpop.f32.mrb[0].mxu0
      %v772 = vadd.f32 0.0, %v771
      %v773 = vpop.f32.mrb[0].mxu0
      %774 = vmatprep.mubr.bf16.mxu0 0
      %775 = vmatmul.mubr.bf16.gmra.mrb[0].mxu0 %v588
      %v776 = vpop.f32.mrb[0].mxu0
      %v777 = vadd.f32 0.0, %v776
      %v778 = vpop.f32.mrb[0].mxu0
      %v779 = vpop.f32.mrb[0].mxu0
      %v780 = vadd.f32 0.0, %v779
      %v781 = vpop.f32.mrb[0].mxu0
      %782 = vmatprep.mubr.bf16.mxu0 0
      %783 = vmatmul.mubr.bf16.gmra.mrb[0].mxu0 %v591
      %v784 = vpop.f32.mrb[0].mxu0
      %v785 = vadd.f32 0.0, %v784
      %v786 = vpop.f32.mrb[0].mxu0
      %v787 = vpop.f32.mrb[0].mxu0
      %v788 = vadd.f32 0.0, %v787
      %v789 = vpop.f32.mrb[0].mxu0
      %790 = vmatprep.mubr.bf16.mxu0 0
      %791 = vmatmul.mubr.bf16.gmra.mrb[0].mxu0 %v594
      %v792 = vpop.f32.mrb[0].mxu0
      %v793 = vadd.f32 0.0, %v792
      %v794 = vpop.f32.mrb[0].mxu0
      %v795 = vpop.f32.mrb[0].mxu0
      %v796 = vadd.f32 0.0, %v795
      %v797 = vpop.f32.mrb[0].mxu0
      %798 = vmatprep.mubr.bf16.mxu0 0
      %799 = vmatmul.mubr.bf16.gmra.mrb[0].mxu0 %v597
      %v800 = vpop.f32.mrb[0].mxu0
      %v801 = vadd.f32 0.0, %v800
      %v802 = vpop.f32.mrb[0].mxu0
      %v803 = vpop.f32.mrb[0].mxu0
      %v804 = vadd.f32 0.0, %v803
      %v805 = vpop.f32.mrb[0].mxu0
      %806 = vmatprep.mubr.bf16.mxu0 0
      %807 = vmatmul.mubr.bf16.gmra.mrb[0].mxu0 %v600
      %v808 = vpop.f32.mrb[0].mxu0
      %v809 = vadd.f32 0.0, %v808
      %v810 = vpop.f32.mrb[0].mxu0
      %v811 = vpop.f32.mrb[0].mxu0
      %v812 = vadd.f32 0.0, %v811
      %v813 = vpop.f32.mrb[0].mxu0
      %814 = vmatprep.mubr.bf16.mxu0 0
      %815 = vmatmul.mubr.bf16.gmra.mrb[0].mxu0 %v603
      %v816 = vpop.f32.mrb[0].mxu0
      %v817 = vadd.f32 0.0, %v816
      %v818 = vpop.f32.mrb[0].mxu0
      %v819 = vpop.f32.mrb[0].mxu0
      %v820 = vadd.f32 0.0, %v819
      %v821 = vpop.f32.mrb[0].mxu0
      %822 = vmatprep.mubr.bf16.mxu0 0
      %823 = vmatmul.mubr.bf16.gmra.mrb[0].mxu0 %v606
      %v824 = vpop.f32.mrb[0].mxu0
      %v825 = vadd.f32 0.0, %v824
      %v826 = vpop.f32.mrb[0].mxu0
      %v827 = vpop.f32.mrb[0].mxu0
      %v828 = vadd.f32 0.0, %v827
      %v829 = vpop.f32.mrb[0].mxu0
      %830 = vmatprep.mubr.bf16.mxu0 0
      %831 = vmatmul.mubr.bf16.gmra.mrb[0].mxu0 %v609
      %v832 = vpop.f32.mrb[0].mxu0
      %v833 = vadd.f32 0.0, %v832
      %v834 = vpop.f32.mrb[0].mxu0
      %v835 = vpop.f32.mrb[0].mxu0
      %v836 = vadd.f32 0.0, %v835
      %v837 = vpop.f32.mrb[0].mxu0
      %838 = vmatprep.mubr.bf16.mxu0 0
      %839 = vmatmul.mubr.bf16.gmra.mrb[0].mxu0 %v612
      %v840 = vpop.f32.mrb[0].mxu0
      %v841 = vadd.f32 0.0, %v840
      %v842 = vpop.f32.mrb[0].mxu0
      %v843 = vpop.f32.mrb[0].mxu0
      %v844 = vadd.f32 0.0, %v843
      %v845 = vpop.f32.mrb[0].mxu0
      %846 = vmatprep.mubr.bf16.mxu0 0
      %847 = vmatmul.mubr.bf16.gmra.mrb[0].mxu0 %v615
      %v848 = vpop.f32.mrb[0].mxu0
      %v849 = vadd.f32 0.0, %v848
      %v850 = vpop.f32.mrb[0].mxu0
      %v851 = vpop.f32.mrb[0].mxu0
      %v852 = vadd.f32 0.0, %v851
      %v853 = vpop.f32.mrb[0].mxu0
      %854 = vmatprep.mubr.bf16.mxu0 0
      %855 = vmatmul.mubr.bf16.gmra.mrb[0].mxu0 %v618
      %v856 = vpop.f32.mrb[0].mxu0
      %v857 = vadd.f32 0.0, %v856
      %v858 = vpop.f32.mrb[0].mxu0
      %v859 = vpop.f32.mrb[0].mxu0
      %v860 = vadd.f32 0.0, %v859
      %v861 = vpop.f32.mrb[0].mxu0
      %862 = vmatprep.mubr.bf16.mxu0 0
      %863 = vmatmul.mubr.bf16.gmra.mrb[0].mxu0 %v621
      %v864 = vpop.f32.mrb[0].mxu0
      %v865 = vadd.f32 0.0, %v864
      %v866 = vpop.f32.mrb[0].mxu0
      %v867 = vpop.f32.mrb[0].mxu0
      %v868 = vadd.f32 0.0, %v867
      %v869 = vpop.f32.mrb[0].mxu0
      %870 = vmatprep.mubr.bf16.mxu0 0
      %871 = vmatmul.mubr.bf16.gmra.mrb[0].mxu0 %v624
      %v872 = vpop.f32.mrb[0].mxu0
      %v873 = vadd.f32 0.0, %v872
      %v874 = vpop.f32.mrb[0].mxu0
      %v875 = vpop.f32.mrb[0].mxu0
      %v876 = vadd.f32 0.0, %v875
      %v877 = vpop.f32.mrb[0].mxu0
      %878 = vmatprep.mubr.bf16.mxu0 0
      %879 = vmatmul.mubr.bf16.gmra.mrb[0].mxu0 %v627
      %v880 = vpop.f32.mrb[0].mxu0
      %v881 = vadd.f32 0.0, %v880
      %v882 = vpop.f32.mrb[0].mxu0
      %v883 = vpop.f32.mrb[0].mxu0
      %v884 = vadd.f32 0.0, %v883
      %v885 = vpop.f32.mrb[0].mxu0
      %886 = vmatprep.mubr.bf16.mxu0 0
      %887 = vmatmul.mubr.bf16.gmra.mrb[0].mxu0 %v630
      %v888 = vpop.f32.mrb[0].mxu0
      %v889 = vadd.f32 0.0, %v888
      %v890 = vpop.f32.mrb[0].mxu0
      %v891 = vpop.f32.mrb[0].mxu0
      %v892 = vadd.f32 0.0, %v891
      %v893 = vpop.f32.mrb[0].mxu0
      %894 = vmatprep.mubr.bf16.mxu0 0
      %895 = vmatmul.mubr.bf16.gmra.mrb[0].mxu0 %v633
      %v896 = vpop.f32.mrb[0].mxu0
      %v897 = vadd.f32 0.0, %v896
      %v898 = vpop.f32.mrb[0].mxu0
      %v899 = vpop.f32.mrb[0].mxu0
      %v900 = vadd.f32 0.0, %v899
      %v901 = vpop.f32.mrb[0].mxu0
      %902 = vmatprep.mubr.bf16.mxu0 0
      %903 = vmatmul.mubr.bf16.gmra.mrb[0].mxu0 %v636
      %v904 = vpop.f32.mrb[0].mxu0
      %v905 = vadd.f32 0.0, %v904
      %v906 = vpop.f32.mrb[0].mxu0
      %v907 = vpop.f32.mrb[0].mxu0
      %v908 = vadd.f32 0.0, %v907
      %v909 = vpop.f32.mrb[0].mxu0
      %910 = vmatprep.mubr.bf16.mxu0 0
      %911 = vmatmul.mubr.bf16.gmra.mrb[0].mxu0 %v639
      %v912 = vpop.f32.mrb[0].mxu0
      %v913 = vadd.f32 0.0, %v912
      %v914 = vpop.f32.mrb[0].mxu0
      %v915 = vpop.f32.mrb[0].mxu0
      %v916 = vadd.f32 0.0, %v915
      %v917 = vpop.f32.mrb[0].mxu0
      %918 = vmatprep.mubr.bf16.mxu0 0
      %919 = vmatmul.mubr.bf16.gmra.mrb[0].mxu0 %v642
      %v920 = vpop.f32.mrb[0].mxu0
      %v921 = vadd.f32 0.0, %v920
      %v922 = vpop.f32.mrb[0].mxu0
      %v923 = vpop.f32.mrb[0].mxu0
      %v924 = vadd.f32 0.0, %v923
      %v925 = vpop.f32.mrb[0].mxu0
      %926 = vmatprep.mubr.bf16.mxu0 0
      %927 = vmatmul.mubr.bf16.gmra.mrb[0].mxu0 %v645
      %v928 = vpop.f32.mrb[0].mxu0
      %v929 = vadd.f32 0.0, %v928
      %v930 = vpop.f32.mrb[0].mxu0
      %v931 = vpop.f32.mrb[0].mxu0
      %v932 = vadd.f32 0.0, %v931
      %v933 = vpop.f32.mrb[0].mxu0
      %934 = vmatprep.mubr.bf16.mxu0 0
      %935 = vmatmul.mubr.bf16.gmra.mrb[0].mxu0 %v648
      %v936 = vpop.f32.mrb[0].mxu0
      %v937 = vadd.f32 0.0, %v936
      %v938 = vpop.f32.mrb[0].mxu0
      %v939 = vpop.f32.mrb[0].mxu0
      %v940 = vadd.f32 0.0, %v939
      %v941 = vpop.f32.mrb[0].mxu0
      %942 = vdwg.mxu0
      %v943 = vld [vmem:[%s261] sm:$0xf]
      %v944 = vld [vmem:[%s261 + $0x4] sm:$0xf]
      %v945 = vld [vmem:[%s261 + $0x8] sm:$0xf]
      %v946 = vld [vmem:[%s261 + $0xc] sm:$0xf]
      %v947 = vld [vmem:[%s261 + $0x10] sm:$0xf]
      %v948 = vld [vmem:[%s261 + $0x14] sm:$0xf]
      %v949 = vld [vmem:[%s261 + $0x18] sm:$0xf]
      %v950 = vld [vmem:[%s261 + $0x1c] sm:$0xf]
      %v951 = vld [vmem:[%s261 + $0x20] sm:$0xf]
      %v952 = vld [vmem:[%s261 + $0x24] sm:$0xf]
      %v953 = vld [vmem:[%s261 + $0x28] sm:$0xf]
      %v954 = vld [vmem:[%s261 + $0x2c] sm:$0xf]
      %v955 = vld [vmem:[%s261 + $0x30] sm:$0xf]
      %v956 = vld [vmem:[%s261 + $0x34] sm:$0xf]
      %v957 = vld [vmem:[%s261 + $0x38] sm:$0xf]
      %v958 = vld [vmem:[%s261 + $0x3c] sm:$0xf]
      %v959 = vld [vmem:[%s261 + $0x40] sm:$0xf]
      %v960 = vld [vmem:[%s261 + $0x44] sm:$0xf]
      %v961 = vld [vmem:[%s261 + $0x48] sm:$0xf]
      %v962 = vld [vmem:[%s261 + $0x4c] sm:$0xf]
      %v963 = vld [vmem:[%s261 + $0x50] sm:$0xf]
      %v964 = vld [vmem:[%s261 + $0x54] sm:$0xf]
      %v965 = vld [vmem:[%s261 + $0x58] sm:$0xf]
      %v966 = vld [vmem:[%s261 + $0x5c] sm:$0xf]
      %v967 = vld [vmem:[%s261 + $0x60] sm:$0xf]
      %v968 = vld [vmem:[%s261 + $0x64] sm:$0xf]
      %v969 = vld [vmem:[%s261 + $0x68] sm:$0xf]
      %v970 = vld [vmem:[%s261 + $0x6c] sm:$0xf]
      %v971 = vld [vmem:[%s261 + $0x70] sm:$0xf]
      %v972 = vld [vmem:[%s261 + $0x74] sm:$0xf]
      %v973 = vld [vmem:[%s261 + $0x78] sm:$0xf]
      %v974 = vld [vmem:[%s261 + $0x7c] sm:$0xf]
      %v975 = vld [vmem:[%s261 + $0x80] sm:$0xf]
      %v976 = vld [vmem:[%s261 + $0x84] sm:$0xf]
      %v977 = vld [vmem:[%s261 + $0x88] sm:$0xf]
      %v978 = vld [vmem:[%s261 + $0x8c] sm:$0xf]
      %v979 = vld [vmem:[%s261 + $0x90] sm:$0xf]
      %v980 = vld [vmem:[%s261 + $0x94] sm:$0xf]
      %v981 = vld [vmem:[%s261 + $0x98] sm:$0xf]
      %v982 = vld [vmem:[%s261 + $0x9c] sm:$0xf]
      %v983 = vld [vmem:[%s261 + $0xa0] sm:$0xf]
      %v984 = vld [vmem:[%s261 + $0xa4] sm:$0xf]
      %v985 = vld [vmem:[%s261 + $0xa8] sm:$0xf]
      %v986 = vld [vmem:[%s261 + $0xac] sm:$0xf]
      %v987 = vld [vmem:[%s261 + $0xb0] sm:$0xf]
      %v988 = vld [vmem:[%s261 + $0xb4] sm:$0xf]
      %v989 = vld [vmem:[%s261 + $0xb8] sm:$0xf]
      %v990 = vld [vmem:[%s261 + $0xbc] sm:$0xf]
      %v991 = vld [vmem:[%s261 + $0xc0] sm:$0xf]
      %v992 = vld [vmem:[%s261 + $0xc4] sm:$0xf]
      %v993 = vld [vmem:[%s261 + $0xc8] sm:$0xf]
      %v994 = vld [vmem:[%s261 + $0xcc] sm:$0xf]
      %v995 = vld [vmem:[%s261 + $0xd0] sm:$0xf]
      %v996 = vld [vmem:[%s261 + $0xd4] sm:$0xf]
      %v997 = vld [vmem:[%s261 + $0xd8] sm:$0xf]
      %v998 = vld [vmem:[%s261 + $0xdc] sm:$0xf]
      %v999 = vld [vmem:[%s261 + $0xe0] sm:$0xf]
      %v1000 = vld [vmem:[%s261 + $0xe4] sm:$0xf]
      %v1001 = vld [vmem:[%s261 + $0xe8] sm:$0xf]
      %v1002 = vld [vmem:[%s261 + $0xec] sm:$0xf]
      %v1003 = vld [vmem:[%s261 + $0xf0] sm:$0xf]
      %v1004 = vld [vmem:[%s261 + $0xf4] sm:$0xf]
      %v1005 = vld [vmem:[%s261 + $0xf8] sm:$0xf]
      %v1006 = vld [vmem:[%s261 + $0xfc] sm:$0xf]
      %v1007 = vld [vmem:[%s3] sm:$0xf]
      %v1008 = vld [vmem:[%s3 + $0x4] sm:$0xf]
      %v1009 = vld [vmem:[%s3 + $0x8] sm:$0xf]
      %v1010 = vld [vmem:[%s3 + $0xc] sm:$0xf]
      %v1011 = vld [vmem:[%s3 + $0x10] sm:$0xf]
      %v1012 = vld [vmem:[%s3 + $0x14] sm:$0xf]
      %v1013 = vld [vmem:[%s3 + $0x18] sm:$0xf]
      %v1014 = vld [vmem:[%s3 + $0x1c] sm:$0xf]
      %v1015 = vld [vmem:[%s3 + $0x20] sm:$0xf]
      %v1016 = vld [vmem:[%s3 + $0x24] sm:$0xf]
      %v1017 = vld [vmem:[%s3 + $0x28] sm:$0xf]
      %v1018 = vld [vmem:[%s3 + $0x2c] sm:$0xf]
      %v1019 = vld [vmem:[%s3 + $0x30] sm:$0xf]
      %v1020 = vld [vmem:[%s3 + $0x34] sm:$0x3]
      %v1085 = vunpack.c.l.b16 %v943
      %v1086 = vunpack.c.l.b16 %v944
      %v1087 = vunpack.c.l.b16 %v945
      %v1088 = vunpack.c.l.b16 %v946
      %v1089 = vunpack.c.l.b16 %v947
      %v1090 = vunpack.c.l.b16 %v948
      %v1091 = vunpack.c.l.b16 %v949
      %v1092 = vunpack.c.l.b16 %v950
      %v1093 = vunpack.c.l.b16 %v951
      %v1094 = vunpack.c.l.b16 %v952
      %v1095 = vunpack.c.l.b16 %v953
      %v1096 = vunpack.c.l.b16 %v954
      %v1097 = vunpack.c.l.b16 %v955
      %v1098 = vunpack.c.l.b16 %v956
      %v1099 = vunpack.c.l.b16 %v957
      %v1100 = vunpack.c.l.b16 %v958
      %v1101 = vunpack.c.l.b16 %v959
      %v1102 = vunpack.c.l.b16 %v960
      %v1103 = vunpack.c.l.b16 %v961
      %v1104 = vunpack.c.l.b16 %v962
      %v1105 = vunpack.c.l.b16 %v963
      %v1106 = vunpack.c.l.b16 %v964
      %v1107 = vunpack.c.l.b16 %v965
      %v1108 = vunpack.c.l.b16 %v966
      %v1109 = vunpack.c.l.b16 %v967
      %v1110 = vunpack.c.l.b16 %v968
      %v1111 = vunpack.c.l.b16 %v969
      %v1112 = vunpack.c.l.b16 %v970
      %v1113 = vunpack.c.l.b16 %v971
      %v1114 = vunpack.c.l.b16 %v972
      %v1115 = vunpack.c.l.b16 %v973
      %v1116 = vunpack.c.l.b16 %v974
      %v1117 = vunpack.c.l.b16 %v975
      %v1118 = vunpack.c.l.b16 %v976
      %v1119 = vunpack.c.l.b16 %v977
      %v1120 = vunpack.c.l.b16 %v978
      %v1121 = vunpack.c.l.b16 %v979
      %v1122 = vunpack.c.l.b16 %v980
      %v1123 = vunpack.c.l.b16 %v981
      %v1124 = vunpack.c.l.b16 %v982
      %v1125 = vunpack.c.l.b16 %v983
      %v1126 = vunpack.c.l.b16 %v984
      %v1127 = vunpack.c.l.b16 %v985
      %v1128 = vunpack.c.l.b16 %v986
      %v1129 = vunpack.c.l.b16 %v987
      %v1130 = vunpack.c.l.b16 %v988
      %v1131 = vunpack.c.l.b16 %v989
      %v1132 = vunpack.c.l.b16 %v990
      %v1133 = vunpack.c.l.b16 %v991
      %v1134 = vunpack.c.l.b16 %v992
      %v1135 = vunpack.c.l.b16 %v993
      %v1136 = vunpack.c.l.b16 %v994
      %v1137 = vunpack.c.l.b16 %v995
      %v1138 = vunpack.c.l.b16 %v996
      %v1139 = vunpack.c.l.b16 %v997
      %v1140 = vunpack.c.l.b16 %v998
      %v1141 = vunpack.c.l.b16 %v999
      %v1142 = vunpack.c.l.b16 %v1000
      %v1143 = vunpack.c.l.b16 %v1001
      %v1144 = vunpack.c.l.b16 %v1002
      %v1145 = vunpack.c.l.b16 %v1003
      %v1146 = vunpack.c.l.b16 %v1004
      %v1147 = vunpack.c.l.b16 %v1005
      %v1148 = vunpack.c.l.b16 %v1006
      %v1149 = vpack.c.b16 %v1086, %v1085
      %v1150 = vpack.c.b16 %v1088, %v1087
      %v1151 = vpack.c.b16 %v1090, %v1089
      %v1152 = vpack.c.b16 %v1092, %v1091
      %v1153 = vpack.c.b16 %v1094, %v1093
      %v1154 = vpack.c.b16 %v1096, %v1095
      %v1155 = vpack.c.b16 %v1098, %v1097
      %v1156 = vpack.c.b16 %v1100, %v1099
      %v1157 = vpack.c.b16 %v1102, %v1101
      %v1158 = vpack.c.b16 %v1104, %v1103
      %v1159 = vpack.c.b16 %v1106, %v1105
      %v1160 = vpack.c.b16 %v1108, %v1107
      %v1161 = vpack.c.b16 %v1110, %v1109
      %v1162 = vpack.c.b16 %v1112, %v1111
      %v1163 = vpack.c.b16 %v1114, %v1113
      %v1164 = vpack.c.b16 %v1116, %v1115
      %v1165 = vpack.c.b16 %v1118, %v1117
      %v1166 = vpack.c.b16 %v1120, %v1119
      %v1167 = vpack.c.b16 %v1122, %v1121
      %v1168 = vpack.c.b16 %v1124, %v1123
      %v1169 = vpack.c.b16 %v1126, %v1125
      %v1170 = vpack.c.b16 %v1128, %v1127
      %v1171 = vpack.c.b16 %v1130, %v1129
      %v1172 = vpack.c.b16 %v1132, %v1131
      %v1173 = vpack.c.b16 %v1134, %v1133
      %v1174 = vpack.c.b16 %v1136, %v1135
      %v1175 = vpack.c.b16 %v1138, %v1137
      %v1176 = vpack.c.b16 %v1140, %v1139
      %v1177 = vpack.c.b16 %v1142, %v1141
      %v1178 = vpack.c.b16 %v1144, %v1143
      %v1179 = vpack.c.b16 %v1146, %v1145
      %v1180 = vpack.c.b16 %v1148, %v1147
      %v1195 = vunpack.c.l.b16 %v1007
      %v1196 = vunpack.c.l.b16 %v1008
      %v1197 = vunpack.c.l.b16 %v1009
      %v1198 = vunpack.c.l.b16 %v1010
      %v1199 = vunpack.c.l.b16 %v1011
      %v1200 = vunpack.c.l.b16 %v1012
      %v1201 = vunpack.c.l.b16 %v1013
      %v1202 = vunpack.c.l.b16 %v1014
      %v1203 = vunpack.c.l.b16 %v1015
      %v1204 = vunpack.c.l.b16 %v1016
      %v1205 = vunpack.c.l.b16 %v1017
      %v1206 = vunpack.c.l.b16 %v1018
      %v1207 = vunpack.c.l.b16 %v1019
      %v1208 = vunpack.c.l.b16 %v1020
      %v1209 = vpack.c.b16 %v1196, %v1195
      %v1210 = vpack.c.b16 %v1198, %v1197
      %v1211 = vpack.c.b16 %v1200, %v1199
      %v1212 = vpack.c.b16 %v1202, %v1201
      %v1213 = vpack.c.b16 %v1204, %v1203
      %v1214 = vpack.c.b16 %v1206, %v1205
      %v1215 = vpack.c.b16 %v1208, %v1207
      %v1223 = vsel %vm553, %v1149, 0
      %v1226 = vsel %vm553, %v1150, 0
      %v1229 = vsel %vm553, %v1151, 0
      %v1232 = vsel %vm553, %v1152, 0
      %v1235 = vsel %vm553, %v1153, 0
      %v1238 = vsel %vm553, %v1154, 0
      %v1241 = vsel %vm553, %v1155, 0
      %v1244 = vsel %vm553, %v1156, 0
      %v1247 = vsel %vm553, %v1157, 0
      %v1250 = vsel %vm553, %v1158, 0
      %v1253 = vsel %vm553, %v1159, 0
      %v1256 = vsel %vm553, %v1160, 0
      %v1259 = vsel %vm553, %v1161, 0
      %v1262 = vsel %vm553, %v1162, 0
      %v1265 = vsel %vm553, %v1163, 0
      %v1268 = vsel %vm553, %v1164, 0
      %v1271 = vsel %vm553, %v1165, 0
      %v1274 = vsel %vm553, %v1166, 0
      %v1277 = vsel %vm553, %v1167, 0
      %v1280 = vsel %vm553, %v1168, 0
      %v1283 = vsel %vm553, %v1169, 0
      %v1286 = vsel %vm553, %v1170, 0
      %v1289 = vsel %vm553, %v1171, 0
      %v1292 = vsel %vm553, %v1172, 0
      %v1295 = vsel %vm553, %v1173, 0
      %v1298 = vsel %vm553, %v1174, 0
      %v1301 = vsel %vm553, %v1175, 0
      %v1304 = vsel %vm553, %v1176, 0
      %v1307 = vsel %vm553, %v1177, 0
      %v1310 = vsel %vm553, %v1178, 0
      %v1313 = vsel %vm553, %v1179, 0
      %v1316 = vsel %vm553, %v1180, 0
      %v1319 = vsel %vm650, %v1215, 0
      %1321 = vmatprep.subr.bf16.mxu0 0
      %1322 = vmatpush1.bf16.msra.mxu0 %v1209
      %1323 = vmatprep.subr.bf16.mxu0 0
      %1324 = vmatpush1.bf16.msra.mxu0 %v1210
      %1325 = vmatprep.subr.bf16.mxu0 0
      %1326 = vmatpush1.bf16.msra.mxu0 %v1211
      %1327 = vmatprep.subr.bf16.mxu0 0
      %1328 = vmatpush1.bf16.msra.mxu0 %v1212
      %1329 = vmatprep.subr.bf16.mxu0 0
      %1330 = vmatpush1.bf16.msra.mxu0 %v1213
      %1331 = vmatprep.subr.bf16.mxu0 0
      %1332 = vmatpush1.bf16.msra.mxu0 %v1214
      %1333 = vmatprep.subr.bf16.mxu0 0
      %1334 = vmatpush1.bf16.msra.mxu0 %v1319
      %1335 = vmatprep.subr.bf16.mxu0 0
      %1336 = vmatpush1.bf16.msra.mxu0 0
      %1337 = vmatprep.subr.bf16.mxu0 0
      %1338 = vmatpush1.bf16.msra.mxu0 0
      %1339 = vmatprep.subr.bf16.mxu0 0
      %1340 = vmatpush1.bf16.msra.mxu0 0
      %1341 = vmatprep.subr.bf16.mxu0 0
      %1342 = vmatpush1.bf16.msra.mxu0 0
      %1343 = vmatprep.subr.bf16.mxu0 0
      %1344 = vmatpush1.bf16.msra.mxu0 0
      %1345 = vmatprep.subr.bf16.mxu0 0
      %1346 = vmatpush1.bf16.msra.mxu0 0
      %1347 = vmatprep.subr.bf16.mxu0 0
      %1348 = vmatpush1.bf16.msra.mxu0 0
      %1349 = vmatprep.subr.bf16.mxu0 0
      %1350 = vmatpush1.bf16.msra.mxu0 0
      %1351 = vmatprep.subr.bf16.mxu0 0
      %1352 = vmatpush1.bf16.msra.mxu0 0
      %1353 = vmatprep.mubr.bf16.mxu0 0
      %1354 = vmatmul.mubr.bf16.gmra.mrb[0].mxu0 %v1223
      %v1355 = vpop.f32.mrb[0].mxu0
      %v1356 = vadd.f32 0.0, %v1355
      %v1357 = vpop.f32.mrb[0].mxu0
      %v1358 = vpop.f32.mrb[0].mxu0
      %v1359 = vadd.f32 0.0, %v1358
      %v1360 = vpop.f32.mrb[0].mxu0
      %1361 = vmatprep.mubr.bf16.mxu0 0
      %1362 = vmatmul.mubr.bf16.gmra.mrb[0].mxu0 %v1226
      %v1363 = vpop.f32.mrb[0].mxu0
      %v1364 = vadd.f32 0.0, %v1363
      %v1365 = vpop.f32.mrb[0].mxu0
      %v1366 = vpop.f32.mrb[0].mxu0
      %v1367 = vadd.f32 0.0, %v1366
      %v1368 = vpop.f32.mrb[0].mxu0
      %1369 = vmatprep.mubr.bf16.mxu0 0
      %1370 = vmatmul.mubr.bf16.gmra.mrb[0].mxu0 %v1229
      %v1371 = vpop.f32.mrb[0].mxu0
      %v1372 = vadd.f32 0.0, %v1371
      %v1373 = vpop.f32.mrb[0].mxu0
      %v1374 = vpop.f32.mrb[0].mxu0
      %v1375 = vadd.f32 0.0, %v1374
      %v1376 = vpop.f32.mrb[0].mxu0
      %1377 = vmatprep.mubr.bf16.mxu0 0
      %1378 = vmatmul.mubr.bf16.gmra.mrb[0].mxu0 %v1232
      %v1379 = vpop.f32.mrb[0].mxu0
      %v1380 = vadd.f32 0.0, %v1379
      %v1381 = vpop.f32.mrb[0].mxu0
      %v1382 = vpop.f32.mrb[0].mxu0
      %v1383 = vadd.f32 0.0, %v1382
      %v1384 = vpop.f32.mrb[0].mxu0
      %1385 = vmatprep.mubr.bf16.mxu0 0
      %1386 = vmatmul.mubr.bf16.gmra.mrb[0].mxu0 %v1235
      %v1387 = vpop.f32.mrb[0].mxu0
      %v1388 = vadd.f32 0.0, %v1387
      %v1389 = vpop.f32.mrb[0].mxu0
      %v1390 = vpop.f32.mrb[0].mxu0
      %v1391 = vadd.f32 0.0, %v1390
      %v1392 = vpop.f32.mrb[0].mxu0
      %1393 = vmatprep.mubr.bf16.mxu0 0
      %1394 = vmatmul.mubr.bf16.gmra.mrb[0].mxu0 %v1238
      %v1395 = vpop.f32.mrb[0].mxu0
      %v1396 = vadd.f32 0.0, %v1395
      %v1397 = vpop.f32.mrb[0].mxu0
      %v1398 = vpop.f32.mrb[0].mxu0
      %v1399 = vadd.f32 0.0, %v1398
      %v1400 = vpop.f32.mrb[0].mxu0
      %1401 = vmatprep.mubr.bf16.mxu0 0
      %1402 = vmatmul.mubr.bf16.gmra.mrb[0].mxu0 %v1241
      %v1403 = vpop.f32.mrb[0].mxu0
      %v1404 = vadd.f32 0.0, %v1403
      %v1405 = vpop.f32.mrb[0].mxu0
      %v1406 = vpop.f32.mrb[0].mxu0
      %v1407 = vadd.f32 0.0, %v1406
      %v1408 = vpop.f32.mrb[0].mxu0
      %1409 = vmatprep.mubr.bf16.mxu0 0
      %1410 = vmatmul.mubr.bf16.gmra.mrb[0].mxu0 %v1244
      %v1411 = vpop.f32.mrb[0].mxu0
      %v1412 = vadd.f32 0.0, %v1411
      %v1413 = vpop.f32.mrb[0].mxu0
      %v1414 = vpop.f32.mrb[0].mxu0
      %v1415 = vadd.f32 0.0, %v1414
      %v1416 = vpop.f32.mrb[0].mxu0
      %1417 = vmatprep.mubr.bf16.mxu0 0
      %1418 = vmatmul.mubr.bf16.gmra.mrb[0].mxu0 %v1247
      %v1419 = vpop.f32.mrb[0].mxu0
      %v1420 = vadd.f32 0.0, %v1419
      %v1421 = vpop.f32.mrb[0].mxu0
      %v1422 = vpop.f32.mrb[0].mxu0
      %v1423 = vadd.f32 0.0, %v1422
      %v1424 = vpop.f32.mrb[0].mxu0
      %1425 = vmatprep.mubr.bf16.mxu0 0
      %1426 = vmatmul.mubr.bf16.gmra.mrb[0].mxu0 %v1250
      %v1427 = vpop.f32.mrb[0].mxu0
      %v1428 = vadd.f32 0.0, %v1427
      %v1429 = vpop.f32.mrb[0].mxu0
      %v1430 = vpop.f32.mrb[0].mxu0
      %v1431 = vadd.f32 0.0, %v1430
      %v1432 = vpop.f32.mrb[0].mxu0
      %1433 = vmatprep.mubr.bf16.mxu0 0
      %1434 = vmatmul.mubr.bf16.gmra.mrb[0].mxu0 %v1253
      %v1435 = vpop.f32.mrb[0].mxu0
      %v1436 = vadd.f32 0.0, %v1435
      %v1437 = vpop.f32.mrb[0].mxu0
      %v1438 = vpop.f32.mrb[0].mxu0
      %v1439 = vadd.f32 0.0, %v1438
      %v1440 = vpop.f32.mrb[0].mxu0
      %1441 = vmatprep.mubr.bf16.mxu0 0
      %1442 = vmatmul.mubr.bf16.gmra.mrb[0].mxu0 %v1256
      %v1443 = vpop.f32.mrb[0].mxu0
      %v1444 = vadd.f32 0.0, %v1443
      %v1445 = vpop.f32.mrb[0].mxu0
      %v1446 = vpop.f32.mrb[0].mxu0
      %v1447 = vadd.f32 0.0, %v1446
      %v1448 = vpop.f32.mrb[0].mxu0
      %1449 = vmatprep.mubr.bf16.mxu0 0
      %1450 = vmatmul.mubr.bf16.gmra.mrb[0].mxu0 %v1259
      %v1451 = vpop.f32.mrb[0].mxu0
      %v1452 = vadd.f32 0.0, %v1451
      %v1453 = vpop.f32.mrb[0].mxu0
      %v1454 = vpop.f32.mrb[0].mxu0
      %v1455 = vadd.f32 0.0, %v1454
      %v1456 = vpop.f32.mrb[0].mxu0
      %1457 = vmatprep.mubr.bf16.mxu0 0
      %1458 = vmatmul.mubr.bf16.gmra.mrb[0].mxu0 %v1262
      %v1459 = vpop.f32.mrb[0].mxu0
      %v1460 = vadd.f32 0.0, %v1459
      %v1461 = vpop.f32.mrb[0].mxu0
      %v1462 = vpop.f32.mrb[0].mxu0
      %v1463 = vadd.f32 0.0, %v1462
      %v1464 = vpop.f32.mrb[0].mxu0
      %1465 = vmatprep.mubr.bf16.mxu0 0
      %1466 = vmatmul.mubr.bf16.gmra.mrb[0].mxu0 %v1265
      %v1467 = vpop.f32.mrb[0].mxu0
      %v1468 = vadd.f32 0.0, %v1467
      %v1469 = vpop.f32.mrb[0].mxu0
      %v1470 = vpop.f32.mrb[0].mxu0
      %v1471 = vadd.f32 0.0, %v1470
      %v1472 = vpop.f32.mrb[0].mxu0
      %1473 = vmatprep.mubr.bf16.mxu0 0
      %1474 = vmatmul.mubr.bf16.gmra.mrb[0].mxu0 %v1268
      %v1475 = vpop.f32.mrb[0].mxu0
      %v1476 = vadd.f32 0.0, %v1475
      %v1477 = vpop.f32.mrb[0].mxu0
      %v1478 = vpop.f32.mrb[0].mxu0
      %v1479 = vadd.f32 0.0, %v1478
      %v1480 = vpop.f32.mrb[0].mxu0
      %1481 = vmatprep.mubr.bf16.mxu0 0
      %1482 = vmatmul.mubr.bf16.gmra.mrb[0].mxu0 %v1271
      %v1483 = vpop.f32.mrb[0].mxu0
      %v1484 = vadd.f32 0.0, %v1483
      %v1485 = vpop.f32.mrb[0].mxu0
      %v1486 = vpop.f32.mrb[0].mxu0
      %v1487 = vadd.f32 0.0, %v1486
      %v1488 = vpop.f32.mrb[0].mxu0
      %1489 = vmatprep.mubr.bf16.mxu0 0
      %1490 = vmatmul.mubr.bf16.gmra.mrb[0].mxu0 %v1274
      %v1491 = vpop.f32.mrb[0].mxu0
      %v1492 = vadd.f32 0.0, %v1491
      %v1493 = vpop.f32.mrb[0].mxu0
      %v1494 = vpop.f32.mrb[0].mxu0
      %v1495 = vadd.f32 0.0, %v1494
      %v1496 = vpop.f32.mrb[0].mxu0
      %1497 = vmatprep.mubr.bf16.mxu0 0
      %1498 = vmatmul.mubr.bf16.gmra.mrb[0].mxu0 %v1277
      %v1499 = vpop.f32.mrb[0].mxu0
      %v1500 = vadd.f32 0.0, %v1499
      %v1501 = vpop.f32.mrb[0].mxu0
      %v1502 = vpop.f32.mrb[0].mxu0
      %v1503 = vadd.f32 0.0, %v1502
      %v1504 = vpop.f32.mrb[0].mxu0
      %1505 = vmatprep.mubr.bf16.mxu0 0
      %1506 = vmatmul.mubr.bf16.gmra.mrb[0].mxu0 %v1280
      %v1507 = vpop.f32.mrb[0].mxu0
      %v1508 = vadd.f32 0.0, %v1507
      %v1509 = vpop.f32.mrb[0].mxu0
      %v1510 = vpop.f32.mrb[0].mxu0
      %v1511 = vadd.f32 0.0, %v1510
      %v1512 = vpop.f32.mrb[0].mxu0
      %1513 = vmatprep.mubr.bf16.mxu0 0
      %1514 = vmatmul.mubr.bf16.gmra.mrb[0].mxu0 %v1283
      %v1515 = vpop.f32.mrb[0].mxu0
      %v1516 = vadd.f32 0.0, %v1515
      %v1517 = vpop.f32.mrb[0].mxu0
      %v1518 = vpop.f32.mrb[0].mxu0
      %v1519 = vadd.f32 0.0, %v1518
      %v1520 = vpop.f32.mrb[0].mxu0
      %1521 = vmatprep.mubr.bf16.mxu0 0
      %1522 = vmatmul.mubr.bf16.gmra.mrb[0].mxu0 %v1286
      %v1523 = vpop.f32.mrb[0].mxu0
      %v1524 = vadd.f32 0.0, %v1523
      %v1525 = vpop.f32.mrb[0].mxu0
      %v1526 = vpop.f32.mrb[0].mxu0
      %v1527 = vadd.f32 0.0, %v1526
      %v1528 = vpop.f32.mrb[0].mxu0
      %1529 = vmatprep.mubr.bf16.mxu0 0
      %1530 = vmatmul.mubr.bf16.gmra.mrb[0].mxu0 %v1289
      %v1531 = vpop.f32.mrb[0].mxu0
      %v1532 = vadd.f32 0.0, %v1531
      %v1533 = vpop.f32.mrb[0].mxu0
      %v1534 = vpop.f32.mrb[0].mxu0
      %v1535 = vadd.f32 0.0, %v1534
      %v1536 = vpop.f32.mrb[0].mxu0
      %1537 = vmatprep.mubr.bf16.mxu0 0
      %1538 = vmatmul.mubr.bf16.gmra.mrb[0].mxu0 %v1292
      %v1539 = vpop.f32.mrb[0].mxu0
      %v1540 = vadd.f32 0.0, %v1539
      %v1541 = vpop.f32.mrb[0].mxu0
      %v1542 = vpop.f32.mrb[0].mxu0
      %v1543 = vadd.f32 0.0, %v1542
      %v1544 = vpop.f32.mrb[0].mxu0
      %1545 = vmatprep.mubr.bf16.mxu0 0
      %1546 = vmatmul.mubr.bf16.gmra.mrb[0].mxu0 %v1295
      %v1547 = vpop.f32.mrb[0].mxu0
      %v1548 = vadd.f32 0.0, %v1547
      %v1549 = vpop.f32.mrb[0].mxu0
      %v1550 = vpop.f32.mrb[0].mxu0
      %v1551 = vadd.f32 0.0, %v1550
      %v1552 = vpop.f32.mrb[0].mxu0
      %1553 = vmatprep.mubr.bf16.mxu0 0
      %1554 = vmatmul.mubr.bf16.gmra.mrb[0].mxu0 %v1298
      %v1555 = vpop.f32.mrb[0].mxu0
      %v1556 = vadd.f32 0.0, %v1555
      %v1557 = vpop.f32.mrb[0].mxu0
      %v1558 = vpop.f32.mrb[0].mxu0
      %v1559 = vadd.f32 0.0, %v1558
      %v1560 = vpop.f32.mrb[0].mxu0
      %1561 = vmatprep.mubr.bf16.mxu0 0
      %1562 = vmatmul.mubr.bf16.gmra.mrb[0].mxu0 %v1301
      %v1563 = vpop.f32.mrb[0].mxu0
      %v1564 = vadd.f32 0.0, %v1563
      %v1565 = vpop.f32.mrb[0].mxu0
      %v1566 = vpop.f32.mrb[0].mxu0
      %v1567 = vadd.f32 0.0, %v1566
      %v1568 = vpop.f32.mrb[0].mxu0
      %1569 = vmatprep.mubr.bf16.mxu0 0
      %1570 = vmatmul.mubr.bf16.gmra.mrb[0].mxu0 %v1304
      %v1571 = vpop.f32.mrb[0].mxu0
      %v1572 = vadd.f32 0.0, %v1571
      %v1573 = vpop.f32.mrb[0].mxu0
      %v1574 = vpop.f32.mrb[0].mxu0
      %v1575 = vadd.f32 0.0, %v1574
      %v1576 = vpop.f32.mrb[0].mxu0
      %1577 = vmatprep.mubr.bf16.mxu0 0
      %1578 = vmatmul.mubr.bf16.gmra.mrb[0].mxu0 %v1307
      %v1579 = vpop.f32.mrb[0].mxu0
      %v1580 = vadd.f32 0.0, %v1579
      %v1581 = vpop.f32.mrb[0].mxu0
      %v1582 = vpop.f32.mrb[0].mxu0
      %v1583 = vadd.f32 0.0, %v1582
      %v1584 = vpop.f32.mrb[0].mxu0
      %1585 = vmatprep.mubr.bf16.mxu0 0
      %1586 = vmatmul.mubr.bf16.gmra.mrb[0].mxu0 %v1310
      %v1587 = vpop.f32.mrb[0].mxu0
      %v1588 = vadd.f32 0.0, %v1587
      %v1589 = vpop.f32.mrb[0].mxu0
      %v1590 = vpop.f32.mrb[0].mxu0
      %v1591 = vadd.f32 0.0, %v1590
      %v1592 = vpop.f32.mrb[0].mxu0
      %1593 = vmatprep.mubr.bf16.mxu0 0
      %1594 = vmatmul.mubr.bf16.gmra.mrb[0].mxu0 %v1313
      %v1595 = vpop.f32.mrb[0].mxu0
      %v1596 = vadd.f32 0.0, %v1595
      %v1597 = vpop.f32.mrb[0].mxu0
      %v1598 = vpop.f32.mrb[0].mxu0
      %v1599 = vadd.f32 0.0, %v1598
      %v1600 = vpop.f32.mrb[0].mxu0
      %1601 = vmatprep.mubr.bf16.mxu0 0
      %1602 = vmatmul.mubr.bf16.gmra.mrb[0].mxu0 %v1316
      %v1603 = vpop.f32.mrb[0].mxu0
      %v1604 = vadd.f32 0.0, %v1603
      %v1605 = vpop.f32.mrb[0].mxu0
      %v1606 = vpop.f32.mrb[0].mxu0
      %v1607 = vadd.f32 0.0, %v1606
      %v1608 = vpop.f32.mrb[0].mxu0
      %1609 = vdwg.mxu0
      %vm1610 = vcmp.ge.f32.partialorder %v689, 0.0
      %vm1611 = vcmp.ge.f32.partialorder %v692, 0.0
      %vm1612 = vcmp.ge.f32.partialorder %v697, 0.0
      %vm1613 = vcmp.ge.f32.partialorder %v700, 0.0
      %vm1614 = vcmp.ge.f32.partialorder %v705, 0.0
      %vm1615 = vcmp.ge.f32.partialorder %v708, 0.0
      %vm1616 = vcmp.ge.f32.partialorder %v713, 0.0
      %vm1617 = vcmp.ge.f32.partialorder %v716, 0.0
      %vm1618 = vcmp.ge.f32.partialorder %v721, 0.0
      %vm1619 = vcmp.ge.f32.partialorder %v724, 0.0
      %vm1620 = vcmp.ge.f32.partialorder %v729, 0.0
      %vm1621 = vcmp.ge.f32.partialorder %v732, 0.0
      %vm1622 = vcmp.ge.f32.partialorder %v737, 0.0
      %vm1623 = vcmp.ge.f32.partialorder %v740, 0.0
      %vm1624 = vcmp.ge.f32.partialorder %v745, 0.0
      %vm1625 = vcmp.ge.f32.partialorder %v748, 0.0
      %vm1626 = vcmp.ge.f32.partialorder %v753, 0.0
      %vm1627 = vcmp.ge.f32.partialorder %v756, 0.0
      %vm1628 = vcmp.ge.f32.partialorder %v761, 0.0
      %vm1629 = vcmp.ge.f32.partialorder %v764, 0.0
      %vm1630 = vcmp.ge.f32.partialorder %v769, 0.0
      %vm1631 = vcmp.ge.f32.partialorder %v772, 0.0
      %vm1632 = vcmp.ge.f32.partialorder %v777, 0.0
      %vm1633 = vcmp.ge.f32.partialorder %v780, 0.0
      %vm1634 = vcmp.ge.f32.partialorder %v785, 0.0
      %vm1635 = vcmp.ge.f32.partialorder %v788, 0.0
      %vm1636 = vcmp.ge.f32.partialorder %v793, 0.0
      %vm1637 = vcmp.ge.f32.partialorder %v796, 0.0
      %vm1638 = vcmp.ge.f32.partialorder %v801, 0.0
      %vm1639 = vcmp.ge.f32.partialorder %v804, 0.0
      %vm1640 = vcmp.ge.f32.partialorder %v809, 0.0
      %vm1641 = vcmp.ge.f32.partialorder %v812, 0.0
      %vm1642 = vcmp.ge.f32.partialorder %v817, 0.0
      %vm1643 = vcmp.ge.f32.partialorder %v820, 0.0
      %vm1644 = vcmp.ge.f32.partialorder %v825, 0.0
      %vm1645 = vcmp.ge.f32.partialorder %v828, 0.0
      %vm1646 = vcmp.ge.f32.partialorder %v833, 0.0
      %vm1647 = vcmp.ge.f32.partialorder %v836, 0.0
      %vm1648 = vcmp.ge.f32.partialorder %v841, 0.0
      %vm1649 = vcmp.ge.f32.partialorder %v844, 0.0
      %vm1650 = vcmp.ge.f32.partialorder %v849, 0.0
      %vm1651 = vcmp.ge.f32.partialorder %v852, 0.0
      %vm1652 = vcmp.ge.f32.partialorder %v857, 0.0
      %vm1653 = vcmp.ge.f32.partialorder %v860, 0.0
      %vm1654 = vcmp.ge.f32.partialorder %v865, 0.0
      %vm1655 = vcmp.ge.f32.partialorder %v868, 0.0
      %vm1656 = vcmp.ge.f32.partialorder %v873, 0.0
      %vm1657 = vcmp.ge.f32.partialorder %v876, 0.0
      %vm1658 = vcmp.ge.f32.partialorder %v881, 0.0
      %vm1659 = vcmp.ge.f32.partialorder %v884, 0.0
      %vm1660 = vcmp.ge.f32.partialorder %v889, 0.0
      %vm1661 = vcmp.ge.f32.partialorder %v892, 0.0
      %vm1662 = vcmp.ge.f32.partialorder %v897, 0.0
      %vm1663 = vcmp.ge.f32.partialorder %v900, 0.0
      %vm1664 = vcmp.ge.f32.partialorder %v905, 0.0
      %vm1665 = vcmp.ge.f32.partialorder %v908, 0.0
      %vm1666 = vcmp.ge.f32.partialorder %v913, 0.0
      %vm1667 = vcmp.ge.f32.partialorder %v916, 0.0
      %vm1668 = vcmp.ge.f32.partialorder %v921, 0.0
      %vm1669 = vcmp.ge.f32.partialorder %v924, 0.0
      %vm1670 = vcmp.ge.f32.partialorder %v929, 0.0
      %vm1671 = vcmp.ge.f32.partialorder %v932, 0.0
      %vm1672 = vcmp.ge.f32.partialorder %v937, 0.0
      %vm1673 = vcmp.ge.f32.partialorder %v940, 0.0
      %v1674 = vmul.f32 %v689, 0.01
      %v1675 = vmul.f32 %v692, 0.01
      %v1676 = vmul.f32 %v697, 0.01
      %v1677 = vmul.f32 %v700, 0.01
      %v1678 = vmul.f32 %v705, 0.01
      %v1679 = vmul.f32 %v708, 0.01
      %v1680 = vmul.f32 %v713, 0.01
      %v1681 = vmul.f32 %v716, 0.01
      %v1682 = vmul.f32 %v721, 0.01
      %v1683 = vmul.f32 %v724, 0.01
      %v1684 = vmul.f32 %v729, 0.01
      %v1685 = vmul.f32 %v732, 0.01
      %v1686 = vmul.f32 %v737, 0.01
      %v1687 = vmul.f32 %v740, 0.01
      %v1688 = vmul.f32 %v745, 0.01
      %v1689 = vmul.f32 %v748, 0.01
      %v1690 = vmul.f32 %v753, 0.01
      %v1691 = vmul.f32 %v756, 0.01
      %v1692 = vmul.f32 %v761, 0.01
      %v1693 = vmul.f32 %v764, 0.01
      %v1694 = vmul.f32 %v769, 0.01
      %v1695 = vmul.f32 %v772, 0.01
      %v1696 = vmul.f32 %v777, 0.01
      %v1697 = vmul.f32 %v780, 0.01
      %v1698 = vmul.f32 %v785, 0.01
      %v1699 = vmul.f32 %v788, 0.01
      %v1700 = vmul.f32 %v793, 0.01
      %v1701 = vmul.f32 %v796, 0.01
      %v1702 = vmul.f32 %v801, 0.01
      %v1703 = vmul.f32 %v804, 0.01
      %v1704 = vmul.f32 %v809, 0.01
      %v1705 = vmul.f32 %v812, 0.01
      %v1706 = vmul.f32 %v817, 0.01
      %v1707 = vmul.f32 %v820, 0.01
      %v1708 = vmul.f32 %v825, 0.01
      %v1709 = vmul.f32 %v828, 0.01
      %v1710 = vmul.f32 %v833, 0.01
      %v1711 = vmul.f32 %v836, 0.01
      %v1712 = vmul.f32 %v841, 0.01
      %v1713 = vmul.f32 %v844, 0.01
      %v1714 = vmul.f32 %v849, 0.01
      %v1715 = vmul.f32 %v852, 0.01
      %v1716 = vmul.f32 %v857, 0.01
      %v1717 = vmul.f32 %v860, 0.01
      %v1718 = vmul.f32 %v865, 0.01
      %v1719 = vmul.f32 %v868, 0.01
      %v1720 = vmul.f32 %v873, 0.01
      %v1721 = vmul.f32 %v876, 0.01
      %v1722 = vmul.f32 %v881, 0.01
      %v1723 = vmul.f32 %v884, 0.01
      %v1724 = vmul.f32 %v889, 0.01
      %v1725 = vmul.f32 %v892, 0.01
      %v1726 = vmul.f32 %v897, 0.01
      %v1727 = vmul.f32 %v900, 0.01
      %v1728 = vmul.f32 %v905, 0.01
      %v1729 = vmul.f32 %v908, 0.01
      %v1730 = vmul.f32 %v913, 0.01
      %v1731 = vmul.f32 %v916, 0.01
      %v1732 = vmul.f32 %v921, 0.01
      %v1733 = vmul.f32 %v924, 0.01
      %v1734 = vmul.f32 %v929, 0.01
      %v1735 = vmul.f32 %v932, 0.01
      %v1736 = vmul.f32 %v937, 0.01
      %v1737 = vmul.f32 %v940, 0.01
      %v1738 = vsel %vm1610, %v689, %v1674
      %v1739 = vsel %vm1611, %v692, %v1675
      %v1740 = vsel %vm1612, %v697, %v1676
      %v1741 = vsel %vm1613, %v700, %v1677
      %v1742 = vsel %vm1614, %v705, %v1678
      %v1743 = vsel %vm1615, %v708, %v1679
      %v1744 = vsel %vm1616, %v713, %v1680
      %v1745 = vsel %vm1617, %v716, %v1681
      %v1746 = vsel %vm1618, %v721, %v1682
      %v1747 = vsel %vm1619, %v724, %v1683
      %v1748 = vsel %vm1620, %v729, %v1684
      %v1749 = vsel %vm1621, %v732, %v1685
      %v1750 = vsel %vm1622, %v737, %v1686
      %v1751 = vsel %vm1623, %v740, %v1687
      %v1752 = vsel %vm1624, %v745, %v1688
      %v1753 = vsel %vm1625, %v748, %v1689
      %v1754 = vsel %vm1626, %v753, %v1690
      %v1755 = vsel %vm1627, %v756, %v1691
      %v1756 = vsel %vm1628, %v761, %v1692
      %v1757 = vsel %vm1629, %v764, %v1693
      %v1758 = vsel %vm1630, %v769, %v1694
      %v1759 = vsel %vm1631, %v772, %v1695
      %v1760 = vsel %vm1632, %v777, %v1696
      %v1761 = vsel %vm1633, %v780, %v1697
      %v1762 = vsel %vm1634, %v785, %v1698
      %v1763 = vsel %vm1635, %v788, %v1699
      %v1764 = vsel %vm1636, %v793, %v1700
      %v1765 = vsel %vm1637, %v796, %v1701
      %v1766 = vsel %vm1638, %v801, %v1702
      %v1767 = vsel %vm1639, %v804, %v1703
      %v1768 = vsel %vm1640, %v809, %v1704
      %v1769 = vsel %vm1641, %v812, %v1705
      %v1770 = vsel %vm1642, %v817, %v1706
      %v1771 = vsel %vm1643, %v820, %v1707
      %v1772 = vsel %vm1644, %v825, %v1708
      %v1773 = vsel %vm1645, %v828, %v1709
      %v1774 = vsel %vm1646, %v833, %v1710
      %v1775 = vsel %vm1647, %v836, %v1711
      %v1776 = vsel %vm1648, %v841, %v1712
      %v1777 = vsel %vm1649, %v844, %v1713
      %v1778 = vsel %vm1650, %v849, %v1714
      %v1779 = vsel %vm1651, %v852, %v1715
      %v1780 = vsel %vm1652, %v857, %v1716
      %v1781 = vsel %vm1653, %v860, %v1717
      %v1782 = vsel %vm1654, %v865, %v1718
      %v1783 = vsel %vm1655, %v868, %v1719
      %v1784 = vsel %vm1656, %v873, %v1720
      %v1785 = vsel %vm1657, %v876, %v1721
      %v1786 = vsel %vm1658, %v881, %v1722
      %v1787 = vsel %vm1659, %v884, %v1723
      %v1788 = vsel %vm1660, %v889, %v1724
      %v1789 = vsel %vm1661, %v892, %v1725
      %v1790 = vsel %vm1662, %v897, %v1726
      %v1791 = vsel %vm1663, %v900, %v1727
      %v1792 = vsel %vm1664, %v905, %v1728
      %v1793 = vsel %vm1665, %v908, %v1729
      %v1794 = vsel %vm1666, %v913, %v1730
      %v1795 = vsel %vm1667, %v916, %v1731
      %v1796 = vsel %vm1668, %v921, %v1732
      %v1797 = vsel %vm1669, %v924, %v1733
      %v1798 = vsel %vm1670, %v929, %v1734
      %v1799 = vsel %vm1671, %v932, %v1735
      %v1800 = vsel %vm1672, %v937, %v1736
      %v1801 = vsel %vm1673, %v940, %v1737
      %vm1802 = vcmp.ge.f32.partialorder %v1356, 0.0
      %vm1803 = vcmp.ge.f32.partialorder %v1359, 0.0
      %vm1804 = vcmp.ge.f32.partialorder %v1364, 0.0
      %vm1805 = vcmp.ge.f32.partialorder %v1367, 0.0
      %vm1806 = vcmp.ge.f32.partialorder %v1372, 0.0
      %vm1807 = vcmp.ge.f32.partialorder %v1375, 0.0
      %vm1808 = vcmp.ge.f32.partialorder %v1380, 0.0
      %vm1809 = vcmp.ge.f32.partialorder %v1383, 0.0
      %vm1810 = vcmp.ge.f32.partialorder %v1388, 0.0
      %vm1811 = vcmp.ge.f32.partialorder %v1391, 0.0
      %vm1812 = vcmp.ge.f32.partialorder %v1396, 0.0
      %vm1813 = vcmp.ge.f32.partialorder %v1399, 0.0
      %vm1814 = vcmp.ge.f32.partialorder %v1404, 0.0
      %vm1815 = vcmp.ge.f32.partialorder %v1407, 0.0
      %vm1816 = vcmp.ge.f32.partialorder %v1412, 0.0
      %vm1817 = vcmp.ge.f32.partialorder %v1415, 0.0
      %vm1818 = vcmp.ge.f32.partialorder %v1420, 0.0
      %vm1819 = vcmp.ge.f32.partialorder %v1423, 0.0
      %vm1820 = vcmp.ge.f32.partialorder %v1428, 0.0
      %vm1821 = vcmp.ge.f32.partialorder %v1431, 0.0
      %vm1822 = vcmp.ge.f32.partialorder %v1436, 0.0
      %vm1823 = vcmp.ge.f32.partialorder %v1439, 0.0
      %vm1824 = vcmp.ge.f32.partialorder %v1444, 0.0
      %vm1825 = vcmp.ge.f32.partialorder %v1447, 0.0
      %vm1826 = vcmp.ge.f32.partialorder %v1452, 0.0
      %vm1827 = vcmp.ge.f32.partialorder %v1455, 0.0
      %vm1828 = vcmp.ge.f32.partialorder %v1460, 0.0
      %vm1829 = vcmp.ge.f32.partialorder %v1463, 0.0
      %vm1830 = vcmp.ge.f32.partialorder %v1468, 0.0
      %vm1831 = vcmp.ge.f32.partialorder %v1471, 0.0
      %vm1832 = vcmp.ge.f32.partialorder %v1476, 0.0
      %vm1833 = vcmp.ge.f32.partialorder %v1479, 0.0
      %vm1834 = vcmp.ge.f32.partialorder %v1484, 0.0
      %vm1835 = vcmp.ge.f32.partialorder %v1487, 0.0
      %vm1836 = vcmp.ge.f32.partialorder %v1492, 0.0
      %vm1837 = vcmp.ge.f32.partialorder %v1495, 0.0
      %vm1838 = vcmp.ge.f32.partialorder %v1500, 0.0
      %vm1839 = vcmp.ge.f32.partialorder %v1503, 0.0
      %vm1840 = vcmp.ge.f32.partialorder %v1508, 0.0
      %vm1841 = vcmp.ge.f32.partialorder %v1511, 0.0
      %vm1842 = vcmp.ge.f32.partialorder %v1516, 0.0
      %vm1843 = vcmp.ge.f32.partialorder %v1519, 0.0
      %vm1844 = vcmp.ge.f32.partialorder %v1524, 0.0
      %vm1845 = vcmp.ge.f32.partialorder %v1527, 0.0
      %vm1846 = vcmp.ge.f32.partialorder %v1532, 0.0
      %vm1847 = vcmp.ge.f32.partialorder %v1535, 0.0
      %vm1848 = vcmp.ge.f32.partialorder %v1540, 0.0
      %vm1849 = vcmp.ge.f32.partialorder %v1543, 0.0
      %vm1850 = vcmp.ge.f32.partialorder %v1548, 0.0
      %vm1851 = vcmp.ge.f32.partialorder %v1551, 0.0
      %vm1852 = vcmp.ge.f32.partialorder %v1556, 0.0
      %vm1853 = vcmp.ge.f32.partialorder %v1559, 0.0
      %vm1854 = vcmp.ge.f32.partialorder %v1564, 0.0
      %vm1855 = vcmp.ge.f32.partialorder %v1567, 0.0
      %vm1856 = vcmp.ge.f32.partialorder %v1572, 0.0
      %vm1857 = vcmp.ge.f32.partialorder %v1575, 0.0
      %vm1858 = vcmp.ge.f32.partialorder %v1580, 0.0
      %vm1859 = vcmp.ge.f32.partialorder %v1583, 0.0
      %vm1860 = vcmp.ge.f32.partialorder %v1588, 0.0
      %vm1861 = vcmp.ge.f32.partialorder %v1591, 0.0
      %vm1862 = vcmp.ge.f32.partialorder %v1596, 0.0
      %vm1863 = vcmp.ge.f32.partialorder %v1599, 0.0
      %vm1864 = vcmp.ge.f32.partialorder %v1604, 0.0
      %vm1865 = vcmp.ge.f32.partialorder %v1607, 0.0
      %v1866 = vmul.f32 %v1356, 0.01
      %v1867 = vmul.f32 %v1359, 0.01
      %v1868 = vmul.f32 %v1364, 0.01
      %v1869 = vmul.f32 %v1367, 0.01
      %v1870 = vmul.f32 %v1372, 0.01
      %v1871 = vmul.f32 %v1375, 0.01
      %v1872 = vmul.f32 %v1380, 0.01
      %v1873 = vmul.f32 %v1383, 0.01
      %v1874 = vmul.f32 %v1388, 0.01
      %v1875 = vmul.f32 %v1391, 0.01
      %v1876 = vmul.f32 %v1396, 0.01
      %v1877 = vmul.f32 %v1399, 0.01
      %v1878 = vmul.f32 %v1404, 0.01
      %v1879 = vmul.f32 %v1407, 0.01
      %v1880 = vmul.f32 %v1412, 0.01
      %v1881 = vmul.f32 %v1415, 0.01
      %v1882 = vmul.f32 %v1420, 0.01
      %v1883 = vmul.f32 %v1423, 0.01
      %v1884 = vmul.f32 %v1428, 0.01
      %v1885 = vmul.f32 %v1431, 0.01
      %v1886 = vmul.f32 %v1436, 0.01
      %v1887 = vmul.f32 %v1439, 0.01
      %v1888 = vmul.f32 %v1444, 0.01
      %v1889 = vmul.f32 %v1447, 0.01
      %v1890 = vmul.f32 %v1452, 0.01
      %v1891 = vmul.f32 %v1455, 0.01
      %v1892 = vmul.f32 %v1460, 0.01
      %v1893 = vmul.f32 %v1463, 0.01
      %v1894 = vmul.f32 %v1468, 0.01
      %v1895 = vmul.f32 %v1471, 0.01
      %v1896 = vmul.f32 %v1476, 0.01
      %v1897 = vmul.f32 %v1479, 0.01
      %v1898 = vmul.f32 %v1484, 0.01
      %v1899 = vmul.f32 %v1487, 0.01
      %v1900 = vmul.f32 %v1492, 0.01
      %v1901 = vmul.f32 %v1495, 0.01
      %v1902 = vmul.f32 %v1500, 0.01
      %v1903 = vmul.f32 %v1503, 0.01
      %v1904 = vmul.f32 %v1508, 0.01
      %v1905 = vmul.f32 %v1511, 0.01
      %v1906 = vmul.f32 %v1516, 0.01
      %v1907 = vmul.f32 %v1519, 0.01
      %v1908 = vmul.f32 %v1524, 0.01
      %v1909 = vmul.f32 %v1527, 0.01
      %v1910 = vmul.f32 %v1532, 0.01
      %v1911 = vmul.f32 %v1535, 0.01
      %v1912 = vmul.f32 %v1540, 0.01
      %v1913 = vmul.f32 %v1543, 0.01
      %v1914 = vmul.f32 %v1548, 0.01
      %v1915 = vmul.f32 %v1551, 0.01
      %v1916 = vmul.f32 %v1556, 0.01
      %v1917 = vmul.f32 %v1559, 0.01
      %v1918 = vmul.f32 %v1564, 0.01
      %v1919 = vmul.f32 %v1567, 0.01
      %v1920 = vmul.f32 %v1572, 0.01
      %v1921 = vmul.f32 %v1575, 0.01
      %v1922 = vmul.f32 %v1580, 0.01
      %v1923 = vmul.f32 %v1583, 0.01
      %v1924 = vmul.f32 %v1588, 0.01
      %v1925 = vmul.f32 %v1591, 0.01
      %v1926 = vmul.f32 %v1596, 0.01
      %v1927 = vmul.f32 %v1599, 0.01
      %v1928 = vmul.f32 %v1604, 0.01
      %v1929 = vmul.f32 %v1607, 0.01
      %v1930 = vsel %vm1802, %v1356, %v1866
      %v1931 = vsel %vm1803, %v1359, %v1867
      %v1932 = vsel %vm1804, %v1364, %v1868
      %v1933 = vsel %vm1805, %v1367, %v1869
      %v1934 = vsel %vm1806, %v1372, %v1870
      %v1935 = vsel %vm1807, %v1375, %v1871
      %v1936 = vsel %vm1808, %v1380, %v1872
      %v1937 = vsel %vm1809, %v1383, %v1873
      %v1938 = vsel %vm1810, %v1388, %v1874
      %v1939 = vsel %vm1811, %v1391, %v1875
      %v1940 = vsel %vm1812, %v1396, %v1876
      %v1941 = vsel %vm1813, %v1399, %v1877
      %v1942 = vsel %vm1814, %v1404, %v1878
      %v1943 = vsel %vm1815, %v1407, %v1879
      %v1944 = vsel %vm1816, %v1412, %v1880
      %v1945 = vsel %vm1817, %v1415, %v1881
      %v1946 = vsel %vm1818, %v1420, %v1882
      %v1947 = vsel %vm1819, %v1423, %v1883
      %v1948 = vsel %vm1820, %v1428, %v1884
      %v1949 = vsel %vm1821, %v1431, %v1885
      %v1950 = vsel %vm1822, %v1436, %v1886
      %v1951 = vsel %vm1823, %v1439, %v1887
      %v1952 = vsel %vm1824, %v1444, %v1888
      %v1953 = vsel %vm1825, %v1447, %v1889
      %v1954 = vsel %vm1826, %v1452, %v1890
      %v1955 = vsel %vm1827, %v1455, %v1891
      %v1956 = vsel %vm1828, %v1460, %v1892
      %v1957 = vsel %vm1829, %v1463, %v1893
      %v1958 = vsel %vm1830, %v1468, %v1894
      %v1959 = vsel %vm1831, %v1471, %v1895
      %v1960 = vsel %vm1832, %v1476, %v1896
      %v1961 = vsel %vm1833, %v1479, %v1897
      %v1962 = vsel %vm1834, %v1484, %v1898
      %v1963 = vsel %vm1835, %v1487, %v1899
      %v1964 = vsel %vm1836, %v1492, %v1900
      %v1965 = vsel %vm1837, %v1495, %v1901
      %v1966 = vsel %vm1838, %v1500, %v1902
      %v1967 = vsel %vm1839, %v1503, %v1903
      %v1968 = vsel %vm1840, %v1508, %v1904
      %v1969 = vsel %vm1841, %v1511, %v1905
      %v1970 = vsel %vm1842, %v1516, %v1906
      %v1971 = vsel %vm1843, %v1519, %v1907
      %v1972 = vsel %vm1844, %v1524, %v1908
      %v1973 = vsel %vm1845, %v1527, %v1909
      %v1974 = vsel %vm1846, %v1532, %v1910
      %v1975 = vsel %vm1847, %v1535, %v1911
      %v1976 = vsel %vm1848, %v1540, %v1912
      %v1977 = vsel %vm1849, %v1543, %v1913
      %v1978 = vsel %vm1850, %v1548, %v1914
      %v1979 = vsel %vm1851, %v1551, %v1915
      %v1980 = vsel %vm1852, %v1556, %v1916
      %v1981 = vsel %vm1853, %v1559, %v1917
      %v1982 = vsel %vm1854, %v1564, %v1918
      %v1983 = vsel %vm1855, %v1567, %v1919
      %v1984 = vsel %vm1856, %v1572, %v1920
      %v1985 = vsel %vm1857, %v1575, %v1921
      %v1986 = vsel %vm1858, %v1580, %v1922
      %v1987 = vsel %vm1859, %v1583, %v1923
      %v1988 = vsel %vm1860, %v1588, %v1924
      %v1989 = vsel %vm1861, %v1591, %v1925
      %v1990 = vsel %vm1862, %v1596, %v1926
      %v1991 = vsel %vm1863, %v1599, %v1927
      %v1992 = vsel %vm1864, %v1604, %v1928
      %v1993 = vsel %vm1865, %v1607, %v1929
      %v1994 = vadd.f32 %v1738, %v1930
      %v1995 = vadd.f32 %v1739, %v1931
      %v1996 = vadd.f32 %v1740, %v1932
      %v1997 = vadd.f32 %v1741, %v1933
      %v1998 = vadd.f32 %v1742, %v1934
      %v1999 = vadd.f32 %v1743, %v1935
      %v2000 = vadd.f32 %v1744, %v1936
      %v2001 = vadd.f32 %v1745, %v1937
      %v2002 = vadd.f32 %v1746, %v1938
      %v2003 = vadd.f32 %v1747, %v1939
      %v2004 = vadd.f32 %v1748, %v1940
      %v2005 = vadd.f32 %v1749, %v1941
      %v2006 = vadd.f32 %v1750, %v1942
      %v2007 = vadd.f32 %v1751, %v1943
      %v2008 = vadd.f32 %v1752, %v1944
      %v2009 = vadd.f32 %v1753, %v1945
      %v2010 = vadd.f32 %v1754, %v1946
      %v2011 = vadd.f32 %v1755, %v1947
      %v2012 = vadd.f32 %v1756, %v1948
      %v2013 = vadd.f32 %v1757, %v1949
      %v2014 = vadd.f32 %v1758, %v1950
      %v2015 = vadd.f32 %v1759, %v1951
      %v2016 = vadd.f32 %v1760, %v1952
      %v2017 = vadd.f32 %v1761, %v1953
      %v2018 = vadd.f32 %v1762, %v1954
      %v2019 = vadd.f32 %v1763, %v1955
      %v2020 = vadd.f32 %v1764, %v1956
      %v2021 = vadd.f32 %v1765, %v1957
      %v2022 = vadd.f32 %v1766, %v1958
      %v2023 = vadd.f32 %v1767, %v1959
      %v2024 = vadd.f32 %v1768, %v1960
      %v2025 = vadd.f32 %v1769, %v1961
      %v2026 = vadd.f32 %v1770, %v1962
      %v2027 = vadd.f32 %v1771, %v1963
      %v2028 = vadd.f32 %v1772, %v1964
      %v2029 = vadd.f32 %v1773, %v1965
      %v2030 = vadd.f32 %v1774, %v1966
      %v2031 = vadd.f32 %v1775, %v1967
      %v2032 = vadd.f32 %v1776, %v1968
      %v2033 = vadd.f32 %v1777, %v1969
      %v2034 = vadd.f32 %v1778, %v1970
      %v2035 = vadd.f32 %v1779, %v1971
      %v2036 = vadd.f32 %v1780, %v1972
      %v2037 = vadd.f32 %v1781, %v1973
      %v2038 = vadd.f32 %v1782, %v1974
      %v2039 = vadd.f32 %v1783, %v1975
      %v2040 = vadd.f32 %v1784, %v1976
      %v2041 = vadd.f32 %v1785, %v1977
      %v2042 = vadd.f32 %v1786, %v1978
      %v2043 = vadd.f32 %v1787, %v1979
      %v2044 = vadd.f32 %v1788, %v1980
      %v2045 = vadd.f32 %v1789, %v1981
      %v2046 = vadd.f32 %v1790, %v1982
      %v2047 = vadd.f32 %v1791, %v1983
      %v2048 = vadd.f32 %v1792, %v1984
      %v2049 = vadd.f32 %v1793, %v1985
      %v2050 = vadd.f32 %v1794, %v1986
      %v2051 = vadd.f32 %v1795, %v1987
      %v2052 = vadd.f32 %v1796, %v1988
      %v2053 = vadd.f32 %v1797, %v1989
      %v2054 = vadd.f32 %v1798, %v1990
      %v2055 = vadd.f32 %v1799, %v1991
      %v2056 = vadd.f32 %v1800, %v1992
      %v2057 = vadd.f32 %v1801, %v1993
      %vm2058 = vcmask 31744
      %2059 = vst.msk [vmem:[%s271] sm:$0xff] %vm2058, %v1994
      %2060 = vst.msk [vmem:[%s271 + $0x8] sm:$0xff] %vm2058, %v1995
      %2061 = vst.msk [vmem:[%s271 + $0x10] sm:$0xff] %vm2058, %v1996
      %2062 = vst.msk [vmem:[%s271 + $0x18] sm:$0xff] %vm2058, %v1997
      %2063 = vst.msk [vmem:[%s271 + $0x20] sm:$0xff] %vm2058, %v1998
      %2064 = vst.msk [vmem:[%s271 + $0x28] sm:$0xff] %vm2058, %v1999
      %2065 = vst.msk [vmem:[%s271 + $0x30] sm:$0xff] %vm2058, %v2000
      %2066 = vst.msk [vmem:[%s271 + $0x38] sm:$0xff] %vm2058, %v2001
      %2067 = vst.msk [vmem:[%s271 + $0x40] sm:$0xff] %vm2058, %v2002
      %2068 = vst.msk [vmem:[%s271 + $0x48] sm:$0xff] %vm2058, %v2003
      %2069 = vst.msk [vmem:[%s271 + $0x50] sm:$0xff] %vm2058, %v2004
      %2070 = vst.msk [vmem:[%s271 + $0x58] sm:$0xff] %vm2058, %v2005
      %2071 = vst.msk [vmem:[%s271 + $0x60] sm:$0xff] %vm2058, %v2006
      %2072 = vst.msk [vmem:[%s271 + $0x68] sm:$0xff] %vm2058, %v2007
      %2073 = vst.msk [vmem:[%s271 + $0x70] sm:$0xff] %vm2058, %v2008
      %2074 = vst.msk [vmem:[%s271 + $0x78] sm:$0xff] %vm2058, %v2009
      %2075 = vst.msk [vmem:[%s271 + $0x80] sm:$0xff] %vm2058, %v2010
      %2076 = vst.msk [vmem:[%s271 + $0x88] sm:$0xff] %vm2058, %v2011
      %2077 = vst.msk [vmem:[%s271 + $0x90] sm:$0xff] %vm2058, %v2012
      %2078 = vst.msk [vmem:[%s271 + $0x98] sm:$0xff] %vm2058, %v2013
      %2079 = vst.msk [vmem:[%s271 + $0xa0] sm:$0xff] %vm2058, %v2014
      %2080 = vst.msk [vmem:[%s271 + $0xa8] sm:$0xff] %vm2058, %v2015
      %2081 = vst.msk [vmem:[%s271 + $0xb0] sm:$0xff] %vm2058, %v2016
      %2082 = vst.msk [vmem:[%s271 + $0xb8] sm:$0xff] %vm2058, %v2017
      %2083 = vst.msk [vmem:[%s271 + $0xc0] sm:$0xff] %vm2058, %v2018
      %2084 = vst.msk [vmem:[%s271 + $0xc8] sm:$0xff] %vm2058, %v2019
      %2085 = vst.msk [vmem:[%s271 + $0xd0] sm:$0xff] %vm2058, %v2020
      %2086 = vst.msk [vmem:[%s271 + $0xd8] sm:$0xff] %vm2058, %v2021
      %2087 = vst.msk [vmem:[%s271 + $0xe0] sm:$0xff] %vm2058, %v2022
      %2088 = vst.msk [vmem:[%s271 + $0xe8] sm:$0xff] %vm2058, %v2023
      %2089 = vst.msk [vmem:[%s271 + $0xf0] sm:$0xff] %vm2058, %v2024
      %2090 = vst.msk [vmem:[%s271 + $0xf8] sm:$0xff] %vm2058, %v2025
      %2091 = vst.msk [vmem:[%s271 + $0x100] sm:$0xff] %vm2058, %v2026
      %2092 = vst.msk [vmem:[%s271 + $0x108] sm:$0xff] %vm2058, %v2027
      %2093 = vst.msk [vmem:[%s271 + $0x110] sm:$0xff] %vm2058, %v2028
      %2094 = vst.msk [vmem:[%s271 + $0x118] sm:$0xff] %vm2058, %v2029
      %2095 = vst.msk [vmem:[%s271 + $0x120] sm:$0xff] %vm2058, %v2030
      %2096 = vst.msk [vmem:[%s271 + $0x128] sm:$0xff] %vm2058, %v2031
      %2097 = vst.msk [vmem:[%s271 + $0x130] sm:$0xff] %vm2058, %v2032
      %2098 = vst.msk [vmem:[%s271 + $0x138] sm:$0xff] %vm2058, %v2033
      %2099 = vst.msk [vmem:[%s271 + $0x140] sm:$0xff] %vm2058, %v2034
      %2100 = vst.msk [vmem:[%s271 + $0x148] sm:$0xff] %vm2058, %v2035
      %2101 = vst.msk [vmem:[%s271 + $0x150] sm:$0xff] %vm2058, %v2036
      %2102 = vst.msk [vmem:[%s271 + $0x158] sm:$0xff] %vm2058, %v2037
      %2103 = vst.msk [vmem:[%s271 + $0x160] sm:$0xff] %vm2058, %v2038
      %2104 = vst.msk [vmem:[%s271 + $0x168] sm:$0xff] %vm2058, %v2039
      %2105 = vst.msk [vmem:[%s271 + $0x170] sm:$0xff] %vm2058, %v2040
      %2106 = vst.msk [vmem:[%s271 + $0x178] sm:$0xff] %vm2058, %v2041
      %2107 = vst.msk [vmem:[%s271 + $0x180] sm:$0xff] %vm2058, %v2042
      %2108 = vst.msk [vmem:[%s271 + $0x188] sm:$0xff] %vm2058, %v2043
      %2109 = vst.msk [vmem:[%s271 + $0x190] sm:$0xff] %vm2058, %v2044
      %2110 = vst.msk [vmem:[%s271 + $0x198] sm:$0xff] %vm2058, %v2045
      %2111 = vst.msk [vmem:[%s271 + $0x1a0] sm:$0xff] %vm2058, %v2046
      %2112 = vst.msk [vmem:[%s271 + $0x1a8] sm:$0xff] %vm2058, %v2047
      %2113 = vst.msk [vmem:[%s271 + $0x1b0] sm:$0xff] %vm2058, %v2048
      %2114 = vst.msk [vmem:[%s271 + $0x1b8] sm:$0xff] %vm2058, %v2049
      %2115 = vst.msk [vmem:[%s271 + $0x1c0] sm:$0xff] %vm2058, %v2050
      %2116 = vst.msk [vmem:[%s271 + $0x1c8] sm:$0xff] %vm2058, %v2051
      %2117 = vst.msk [vmem:[%s271 + $0x1d0] sm:$0xff] %vm2058, %v2052
      %2118 = vst.msk [vmem:[%s271 + $0x1d8] sm:$0xff] %vm2058, %v2053
      %2119 = vst.msk [vmem:[%s271 + $0x1e0] sm:$0xff] %vm2058, %v2054
      %2120 = vst.msk [vmem:[%s271 + $0x1e8] sm:$0xff] %vm2058, %v2055
      %2121 = vst.msk [vmem:[%s271 + $0x1f0] sm:$0xff] %vm2058, %v2056
      %2122 = vst.msk [vmem:[%s271 + $0x1f8] sm:$0xff] %vm2058, %v2057
      %s2123 = smul.u32 64, %s20
      %p2124 = scmp.lt.s32.totalorder %s19, 1
      %s2125 = scalar_select %p2124, %s19, 1
      %p2126 = scmp.lt.s32.totalorder %s2123, 255
      %s2127 = scalar_select %p2126, %s2123, 255
      %s2128 = smul.addr %s2125, 256
      %s2129 = sadd.s32 %s2127, %s2128
      %s2130 = smul.addr %s2129, 8
      %s2131 = scalar_lea.vmem %s4, %s2130
      // Predicated region
      $region37: #{glconv_forward.1} parent=35 // pred_check
        %p2132 = pneg %p145
      $region38: #{glconv_forward.1} parent=35 // pred_check_branch
        %2134 = sbr.rel (%p2132) target = $region40
      $region39: #{glconv_forward.1} parent=35 // pred_region
        %s2135 = smul.u32 64, %s20
      $region40: #{glconv_forward.1} parent=35 // pred_fallthru
        _
    $region36: #{glconv_forward.1} parent=5 // pred_fallthru
      _
    %p2136 = scmp.le.s32.totalorder 2, %s10
    // Predicated region
    $region41: #{glconv_forward.1} parent=5 // pred_check
      %p2137 = pneg %p2136
    $region42: #{glconv_forward.1} parent=5 // pred_check_branch
      %2139 = sbr.rel (%p2137) target = $region44
    $region43: #{glconv_forward.1} parent=5 // pred_region
      %s2140 = ssub.s32 %s10, 2
      // Predicated region
      $region45: #{glconv_forward.1} parent=43 // pred_check
        %p2141 = pneg %p151
      $region46: #{glconv_forward.1} parent=43 // pred_check_branch
        %2143 = sbr.rel (%p2141) target = $region48
      $region47: #{glconv_forward.1} parent=43 // pred_region
        %s2144 = smul.u32 64, %s22
        %p2145 = scmp.lt.s32.totalorder %s21, 1
        %s2146 = scalar_select %p2145, %s21, 1
        %p2147 = scmp.lt.s32.totalorder %s2144, 255
        %s2148 = scalar_select %p2147, %s2144, 255
        %s2149 = smul.addr %s2146, 256
        %s2150 = sadd.s32 %s2148, %s2149
        %s2151 = smul.addr %s2150, 8
        %s2152 = scalar_lea.vmem %s4, %s2151
      $region48: #{glconv_forward.1} parent=43 // pred_fallthru
        _
    $region44: #{glconv_forward.1} parent=5 // pred_fallthru
      _
  $region6: #{glconv_forward.1} parent=0 // loop_footer
    %s14 = sadd.s32 1, %s10
  $region7: #{glconv_forward.1} parent=0 // loop_footer_branch
    %9 = sbr.rel target = $region3
  $region8: #{glconv_forward.1} parent=0 // loop_exit
    _

</llo_original>
